<compile_context>
chip_gen: v7x
topology: tpu7x:2x2x1
jax: 0.10.0
libtpu: 0.0.40
codegen_flags: <defaults>
</compile_context>

<pallas_src>
import jax
import jax.numpy as jnp
from jax.experimental import pallas as pl
from jax.experimental.pallas import tpu as pltpu

# ----- model hyper-parameters (consistent with convnet.__init__, small demo sizes) -----
CLASS_NUM = 4
EEG_CHANNELS = 8          # eeg_channels
TIME_LEN = 160            # input_time_length
KT = 25                   # conv_time kernel (1, 25)
N_TIME_FILT = 40
N_SPAT_FILT = 20
POOL = 75
POOL_STRIDE = 15
BN_EPS = 1e-5
LOG_EPS = 1e-6            # braindecode safe_log eps

T1 = TIME_LEN - KT + 1                        # time length after conv_time
L_OUT = (T1 - POOL) // POOL_STRIDE + 1        # final_conv_length ('auto')
FEAT_DIM = N_SPAT_FILT * L_OUT                # 20 * final_conv_length
MAX_TB = 32                                   # batch-block cap
_TB_ALIGN = 4                                 # TB % 4 == 0  ->  TB*TIME_LEN % 128 == 0

# The in-kernel circular lane rotation leaves garbage only at t >= TIME_LEN-(KT-1);
# this is safe only because every pooling window ends strictly before that point.
assert (L_OUT - 1) * POOL_STRIDE + POOL <= T1
assert (L_OUT - 1) * POOL_STRIDE + POOL - 1 + (KT - 1) < TIME_LEN, \
    "circular-roll wrap-around would leak into a pooling window"
assert MAX_TB % _TB_ALIGN == 0
assert (_TB_ALIGN * TIME_LEN) % 128 == 0      # lane-aligned rolls / x blocks


def _feature_kernel(x_ref, w_ref, b_ref, p_ref, out_ref, col_ref, q2_ref):
    """conv(+BN) -> square -> avg-pool -> safe_log for one batch block.

    x_ref:   (C, TB*T)      batch block; element b occupies lanes [b*T, (b+1)*T)
    w_ref:   (20, KT*C)     folded conv_time*conv_spat*BN weight, row order k*C + c
    b_ref:   (20, 1)        folded bias
    p_ref:   (T, L)         0/1 pooling-window indicator (scaled by 1/POOL below)
    out_ref: (1, TB*20, L)  log(avg-pooled squared activations), row order b*20 + o
    col_ref: (KT*C, TB*T)   VMEM scratch: im2col of the whole block
    q2_ref:  (TB*20, T)     VMEM scratch: squared activations, per-element time-major
    """
    c = x_ref.shape[0]
    tbt = x_ref.shape[1]
    tb = tbt // TIME_LEN

    x = x_ref[...]                                              # (C, TB*T)

    # im2col row (k*C + c), col (b*T + t) = x[c, b*T + t + k].  Each k is a single
    # XLU lane rotation + sublane-aligned scratch store; the wrap-around only lands
    # in the t >= T1 tail columns, which the pooling matrix never reads.
    col_ref[0:c, :] = x
    for k in range(1, KT):
        col_ref[k * c:(k + 1) * c, :] = pltpu.roll(x, shift=tbt - k, axis=1)

    # single MXU matmul for the whole folded conv stack (K=200, N=TB*T)
    s = jnp.dot(w_ref[...], col_ref[...],
                preferred_element_type=jnp.float32) + b_ref[...]        # (20, TB*T)

    # square nonlinearity fused with the re-layout to (TB*20, T): row b*20 + o.
    # This makes pooling a single (TB*20, T) x (T, L) matmul (no O(TB^2) kron).
    for b in range(tb):
        sb = s[:, b * TIME_LEN:(b + 1) * TIME_LEN]                       # (20, T)
        q2_ref[b * N_SPAT_FILT:(b + 1) * N_SPAT_FILT, :] = sb * sb

    pooled = jnp.dot(q2_ref[...], p_ref[...],
                     preferred_element_type=jnp.float32) * jnp.float32(1.0 / POOL)
    # Output last dim is L_OUT (<128) -> a handful of masked stores on a 12.8 KB
    # result; padding lanes to 128 would cost 25x more HBM writeback, so keep it.
    out_ref[0] = jnp.log(jnp.maximum(pooled, LOG_EPS))                   # safe_log


def _choose_blocking(batch):
    """Pick (TB, G, B_pad): G >= 2 grid steps (v7x megacore), TB lane-aligned."""
    grid = max(2, (batch + MAX_TB - 1) // MAX_TB)
    tb = (batch + grid - 1) // grid
    tb = min(MAX_TB, ((tb + _TB_ALIGN - 1) // _TB_ALIGN) * _TB_ALIGN)
    return tb, grid, tb * grid


def convnet_forward(x, params):
    """x: (B, 1, C_eeg, T) float32. Returns (feature (B, 20*L), logits (B, class))."""
    (conv_time_w, conv_time_b, conv_spat_w, conv_spat_b,
     bn_gamma, bn_beta, bn_mean, bn_var, fc_w, fc_b) = params
    B = x.shape[0]
    TB, G, B_pad = _choose_blocking(B)

    # ---- wrapper-side algebra: fold conv_time + conv_spat + eval BN into one matmul ----
    wt = conv_time_w.reshape(N_TIME_FILT, KT)                    # (40, 25)  [f, k]
    ws = conv_spat_w[..., 0]                                     # (20, 40, C) [o, f, c]
    scale = bn_gamma / jnp.sqrt(bn_var + BN_EPS)                 # (20,)
    shift = bn_beta - bn_mean * scale
    w_eff = (jnp.einsum('ofc,fk->okc', ws, wt)
             * scale[:, None, None]).reshape(N_SPAT_FILT, KT * EEG_CHANNELS)
    b_eff = (scale * (jnp.einsum('ofc,f->o', ws, conv_time_b) + conv_spat_b)
             + shift).reshape(N_SPAT_FILT, 1)

    # per-element pooling-window indicator (exact 0/1; scaled by 1/POOL in-kernel)
    t_idx = jnp.arange(TIME_LEN)[:, None]
    l_idx = jnp.arange(L_OUT)[None, :]
    p_mat = ((t_idx >= l_idx * POOL_STRIDE)
             & (t_idx < l_idx * POOL_STRIDE + POOL)).astype(jnp.float32)   # (T, L)

    # input layout: (C, B_pad*T) -- time on lanes, batch elements concatenated
    x3d = x[:, 0, :, :]                                          # (B, C, T)
    if B_pad != B:
        x3d = jnp.concatenate(
            [x3d, jnp.zeros((B_pad - B, EEG_CHANNELS, TIME_LEN), x3d.dtype)], axis=0)
    x_flat = jnp.transpose(x3d, (1, 0, 2)).reshape(EEG_CHANNELS, B_pad * TIME_LEN)

    logp = pl.pallas_call(
        _feature_kernel,
        out_shape=jax.ShapeDtypeStruct((G, TB * N_SPAT_FILT, L_OUT), jnp.float32),
        grid_spec=pltpu.PrefetchScalarGridSpec(
            num_scalar_prefetch=0,
            grid=(G,),
            in_specs=[
                pl.BlockSpec((EEG_CHANNELS, TB * TIME_LEN), lambda g: (0, g)),
                pl.BlockSpec((N_SPAT_FILT, KT * EEG_CHANNELS), lambda g: (0, 0)),
                pl.BlockSpec((N_SPAT_FILT, 1), lambda g: (0, 0)),
                pl.BlockSpec((TIME_LEN, L_OUT), lambda g: (0, 0)),
            ],
            out_specs=pl.BlockSpec((1, TB * N_SPAT_FILT, L_OUT), lambda g: (g, 0, 0)),
            scratch_shapes=[
                pltpu.VMEM((KT * EEG_CHANNELS, TB * TIME_LEN), jnp.float32),
                pltpu.VMEM((TB * N_SPAT_FILT, TIME_LEN), jnp.float32),
            ],
        ),
        compiler_params=pltpu.CompilerParams(
            dimension_semantics=("parallel",),
            vmem_limit_bytes=32 * 1024 * 1024,   # ~7 MB used at TB=32; plenty of headroom
        ),
    )(x_flat, w_eff, b_eff, p_mat)

    # (G, TB*20, L) with row b*20+o  ->  (B, 20*L) channel-major (PyTorch .view(B, -1))
    feature = logp.reshape(B_pad, N_SPAT_FILT, L_OUT)[:B].reshape(B, FEAT_DIM)

    # tiny classifier in plain XLA: a second kernel launch costs more than it computes
    logits = feature @ fc_w.T + fc_b[None, :]
    return feature, logits


def reference_forward(x, params):
    """Pure-JAX reference (same math, no Pallas) for validation."""
    (wt, bt, ws, bs, gamma, beta, mean, var, fcw, fcb) = params
    B = x.shape[0]
    xt = x[:, 0]                                                           # (B, C, T)
    patches = jnp.stack([xt[:, :, k:k + T1] for k in range(KT)], axis=-1)  # (B,C,T1,25)
    h = jnp.einsum('bctk,fk->bfct', patches, wt.reshape(N_TIME_FILT, KT),
                   precision=jax.lax.Precision.HIGHEST) + bt[None, :, None, None]
    s = jnp.einsum('bfct,ofc->bot', h, ws[..., 0],
                   precision=jax.lax.Precision.HIGHEST) + bs[None, :, None]
    s = ((s - mean[None, :, None]) / jnp.sqrt(var + BN_EPS)[None, :, None]
         * gamma[None, :, None] + beta[None, :, None])
    s = s * s
    pooled = jnp.stack(
        [jnp.mean(s[:, :, l * POOL_STRIDE: l * POOL_STRIDE + POOL], axis=-1)
         for l in range(L_OUT)], axis=-1)                                  # (B,20,L)
    feat = jnp.log(jnp.maximum(pooled, LOG_EPS)).reshape(B, -1)
    logits = feat @ fcw.T + fcb
    return feat, logits


if __name__ == "__main__":
    key = jax.random.PRNGKey(0)
    kx, k1, k2, k3, k4 = jax.random.split(key, 5)

    def xavier(k, shape, fan_in, fan_out):
        bound = (6.0 / (fan_in + fan_out)) ** 0.5
        return jax.random.uniform(k, shape, jnp.float32, -bound, bound)

    # deterministic synthetic parameters (shapes from convnet.__init__)
    conv_time_w = xavier(k1, (N_TIME_FILT, 1, 1, KT), KT, N_TIME_FILT * KT)
    conv_time_b = jnp.zeros((N_TIME_FILT,), jnp.float32)
    conv_spat_w = xavier(k2, (N_SPAT_FILT, N_TIME_FILT, EEG_CHANNELS, 1),
                         N_TIME_FILT * EEG_CHANNELS, N_SPAT_FILT * EEG_CHANNELS)
    conv_spat_b = jax.random.uniform(k3, (N_SPAT_FILT,), jnp.float32, -0.05, 0.05)
    bn_gamma = jnp.ones((N_SPAT_FILT,), jnp.float32)
    bn_beta = jnp.zeros((N_SPAT_FILT,), jnp.float32)
    bn_mean = jnp.zeros((N_SPAT_FILT,), jnp.float32)
    bn_var = jnp.ones((N_SPAT_FILT,), jnp.float32)
    fc_w = xavier(k4, (CLASS_NUM, FEAT_DIM), FEAT_DIM, CLASS_NUM)
    fc_b = jnp.zeros((CLASS_NUM,), jnp.float32)

    params = (conv_time_w, conv_time_b, conv_spat_w, conv_spat_b,
              bn_gamma, bn_beta, bn_mean, bn_var, fc_w, fc_b)

    x = jax.random.normal(kx, (2, 1, EEG_CHANNELS, TIME_LEN), jnp.float32)

    feature, logits = jax.block_until_ready(convnet_forward(x, params))

    feat_ref, logits_ref = reference_forward(x, params)
    assert feature.shape == (2, FEAT_DIM) and logits.shape == (2, CLASS_NUM)
    assert jnp.allclose(feature, feat_ref, rtol=2e-3, atol=2e-3)
    assert jnp.allclose(logits, logits_ref, rtol=2e-3, atol=2e-3)
    print("KERNEL_OK")
</pallas_src>

<mosaic_0001>
module attributes {stable_mosaic.version = 11 : i64} {
  func.func @_feature_kernel(%arg0: i32, %arg1: memref<8x640xf32, #tpu.memory_space<vmem>>, %arg2: memref<20x200xf32, #tpu.memory_space<vmem>>, %arg3: memref<20x1xf32, #tpu.memory_space<vmem>>, %arg4: memref<160x5xf32, #tpu.memory_space<vmem>>, %arg5: memref<1x80x5xf32, #tpu.memory_space<vmem>>, %arg6: memref<200x640xf32, #tpu.memory_space<vmem>>, %arg7: memref<80x160xf32, #tpu.memory_space<vmem>>) attributes {dimension_semantics = [#tpu.dimension_semantics<parallel>], iteration_bounds = array<i64: 2>, scalar_prefetch = 0 : i64, scratch_operands = 2 : i64, tpu.core_type = #tpu.core_type<tc>, window_params = [{transform_indices = @transform_0, window_bounds = array<i64: 8, 640>}, {pipeline_mode = #tpu.pipeline_mode<synchronous>, transform_indices = @transform_1, window_bounds = array<i64: 20, 200>}, {pipeline_mode = #tpu.pipeline_mode<synchronous>, transform_indices = @transform_2, window_bounds = array<i64: 20, 1>}, {pipeline_mode = #tpu.pipeline_mode<synchronous>, transform_indices = @transform_3, window_bounds = array<i64: 160, 5>}, {transform_indices = @transform_4, window_bounds = array<i64: 1, 80, 5>}]} {
    %c0 = arith.constant 0 : index
    %c0_0 = arith.constant 0 : index
    %0 = vector.load %arg1[%c0, %c0_0] : memref<8x640xf32, #tpu.memory_space<vmem>>, vector<8x640xf32>
    %c0_1 = arith.constant 0 : index
    %c0_2 = arith.constant 0 : index
    %1 = vector.load %arg6[%c0_1, %c0_2] : memref<200x640xf32, #tpu.memory_space<vmem>>, vector<8x640xf32>
    tpu.vector_store %arg6[%c0_1, %c0_2], %0 {strides = array<i32>} : memref<200x640xf32, #tpu.memory_space<vmem>>, vector<8x640xf32>,
    %c639_i32 = arith.constant 639 : i32
    %2 = tpu.dynamic_rotate %0 by %c639_i32 dim 1 : vector<8x640xf32>, i32 -> vector<8x640xf32>
    %c8 = arith.constant 8 : index
    %c0_3 = arith.constant 0 : index
    %3 = vector.load %arg6[%c8, %c0_3] : memref<200x640xf32, #tpu.memory_space<vmem>>, vector<8x640xf32>
    tpu.vector_store %arg6[%c8, %c0_3], %2 {strides = array<i32>} : memref<200x640xf32, #tpu.memory_space<vmem>>, vector<8x640xf32>,
    %c638_i32 = arith.constant 638 : i32
    %4 = tpu.dynamic_rotate %0 by %c638_i32 dim 1 : vector<8x640xf32>, i32 -> vector<8x640xf32>
    %c16 = arith.constant 16 : index
    %c0_4 = arith.constant 0 : index
    %5 = vector.load %arg6[%c16, %c0_4] : memref<200x640xf32, #tpu.memory_space<vmem>>, vector<8x640xf32>
    tpu.vector_store %arg6[%c16, %c0_4], %4 {strides = array<i32>} : memref<200x640xf32, #tpu.memory_space<vmem>>, vector<8x640xf32>,
    %c637_i32 = arith.constant 637 : i32
    %6 = tpu.dynamic_rotate %0 by %c637_i32 dim 1 : vector<8x640xf32>, i32 -> vector<8x640xf32>
    %c24 = arith.constant 24 : index
    %c0_5 = arith.constant 0 : index
    %7 = vector.load %arg6[%c24, %c0_5] : memref<200x640xf32, #tpu.memory_space<vmem>>, vector<8x640xf32>
    tpu.vector_store %arg6[%c24, %c0_5], %6 {strides = array<i32>} : memref<200x640xf32, #tpu.memory_space<vmem>>, vector<8x640xf32>,
    %c636_i32 = arith.constant 636 : i32
    %8 = tpu.dynamic_rotate %0 by %c636_i32 dim 1 : vector<8x640xf32>, i32 -> vector<8x640xf32>
    %c32 = arith.constant 32 : index
    %c0_6 = arith.constant 0 : index
    %9 = vector.load %arg6[%c32, %c0_6] : memref<200x640xf32, #tpu.memory_space<vmem>>, vector<8x640xf32>
    tpu.vector_store %arg6[%c32, %c0_6], %8 {strides = array<i32>} : memref<200x640xf32, #tpu.memory_space<vmem>>, vector<8x640xf32>,
    %c635_i32 = arith.constant 635 : i32
    %10 = tpu.dynamic_rotate %0 by %c635_i32 dim 1 : vector<8x640xf32>, i32 -> vector<8x640xf32>
    %c40 = arith.constant 40 : index
    %c0_7 = arith.constant 0 : index
    %11 = vector.load %arg6[%c40, %c0_7] : memref<200x640xf32, #tpu.memory_space<vmem>>, vector<8x640xf32>
    tpu.vector_store %arg6[%c40, %c0_7], %10 {strides = array<i32>} : memref<200x640xf32, #tpu.memory_space<vmem>>, vector<8x640xf32>,
    %c634_i32 = arith.constant 634 : i32
    %12 = tpu.dynamic_rotate %0 by %c634_i32 dim 1 : vector<8x640xf32>, i32 -> vector<8x640xf32>
    %c48 = arith.constant 48 : index
    %c0_8 = arith.constant 0 : index
    %13 = vector.load %arg6[%c48, %c0_8] : memref<200x640xf32, #tpu.memory_space<vmem>>, vector<8x640xf32>
    tpu.vector_store %arg6[%c48, %c0_8], %12 {strides = array<i32>} : memref<200x640xf32, #tpu.memory_space<vmem>>, vector<8x640xf32>,
    %c633_i32 = arith.constant 633 : i32
    %14 = tpu.dynamic_rotate %0 by %c633_i32 dim 1 : vector<8x640xf32>, i32 -> vector<8x640xf32>
    %c56 = arith.constant 56 : index
    %c0_9 = arith.constant 0 : index
    %15 = vector.load %arg6[%c56, %c0_9] : memref<200x640xf32, #tpu.memory_space<vmem>>, vector<8x640xf32>
    tpu.vector_store %arg6[%c56, %c0_9], %14 {strides = array<i32>} : memref<200x640xf32, #tpu.memory_space<vmem>>, vector<8x640xf32>,
    %c632_i32 = arith.constant 632 : i32
    %16 = tpu.dynamic_rotate %0 by %c632_i32 dim 1 : vector<8x640xf32>, i32 -> vector<8x640xf32>
    %c64 = arith.constant 64 : index
    %c0_10 = arith.constant 0 : index
    %17 = vector.load %arg6[%c64, %c0_10] : memref<200x640xf32, #tpu.memory_space<vmem>>, vector<8x640xf32>
    tpu.vector_store %arg6[%c64, %c0_10], %16 {strides = array<i32>} : memref<200x640xf32, #tpu.memory_space<vmem>>, vector<8x640xf32>,
    %c631_i32 = arith.constant 631 : i32
    %18 = tpu.dynamic_rotate %0 by %c631_i32 dim 1 : vector<8x640xf32>, i32 -> vector<8x640xf32>
    %c72 = arith.constant 72 : index
    %c0_11 = arith.constant 0 : index
    %19 = vector.load %arg6[%c72, %c0_11] : memref<200x640xf32, #tpu.memory_space<vmem>>, vector<8x640xf32>
    tpu.vector_store %arg6[%c72, %c0_11], %18 {strides = array<i32>} : memref<200x640xf32, #tpu.memory_space<vmem>>, vector<8x640xf32>,
    %c630_i32 = arith.constant 630 : i32
    %20 = tpu.dynamic_rotate %0 by %c630_i32 dim 1 : vector<8x640xf32>, i32 -> vector<8x640xf32>
    %c80 = arith.constant 80 : index
    %c0_12 = arith.constant 0 : index
    %21 = vector.load %arg6[%c80, %c0_12] : memref<200x640xf32, #tpu.memory_space<vmem>>, vector<8x640xf32>
    tpu.vector_store %arg6[%c80, %c0_12], %20 {strides = array<i32>} : memref<200x640xf32, #tpu.memory_space<vmem>>, vector<8x640xf32>,
    %c629_i32 = arith.constant 629 : i32
    %22 = tpu.dynamic_rotate %0 by %c629_i32 dim 1 : vector<8x640xf32>, i32 -> vector<8x640xf32>
    %c88 = arith.constant 88 : index
    %c0_13 = arith.constant 0 : index
    %23 = vector.load %arg6[%c88, %c0_13] : memref<200x640xf32, #tpu.memory_space<vmem>>, vector<8x640xf32>
    tpu.vector_store %arg6[%c88, %c0_13], %22 {strides = array<i32>} : memref<200x640xf32, #tpu.memory_space<vmem>>, vector<8x640xf32>,
    %c628_i32 = arith.constant 628 : i32
    %24 = tpu.dynamic_rotate %0 by %c628_i32 dim 1 : vector<8x640xf32>, i32 -> vector<8x640xf32>
    %c96 = arith.constant 96 : index
    %c0_14 = arith.constant 0 : index
    %25 = vector.load %arg6[%c96, %c0_14] : memref<200x640xf32, #tpu.memory_space<vmem>>, vector<8x640xf32>
    tpu.vector_store %arg6[%c96, %c0_14], %24 {strides = array<i32>} : memref<200x640xf32, #tpu.memory_space<vmem>>, vector<8x640xf32>,
    %c627_i32 = arith.constant 627 : i32
    %26 = tpu.dynamic_rotate %0 by %c627_i32 dim 1 : vector<8x640xf32>, i32 -> vector<8x640xf32>
    %c104 = arith.constant 104 : index
    %c0_15 = arith.constant 0 : index
    %27 = vector.load %arg6[%c104, %c0_15] : memref<200x640xf32, #tpu.memory_space<vmem>>, vector<8x640xf32>
    tpu.vector_store %arg6[%c104, %c0_15], %26 {strides = array<i32>} : memref<200x640xf32, #tpu.memory_space<vmem>>, vector<8x640xf32>,
    %c626_i32 = arith.constant 626 : i32
    %28 = tpu.dynamic_rotate %0 by %c626_i32 dim 1 : vector<8x640xf32>, i32 -> vector<8x640xf32>
    %c112 = arith.constant 112 : index
    %c0_16 = arith.constant 0 : index
    %29 = vector.load %arg6[%c112, %c0_16] : memref<200x640xf32, #tpu.memory_space<vmem>>, vector<8x640xf32>
    tpu.vector_store %arg6[%c112, %c0_16], %28 {strides = array<i32>} : memref<200x640xf32, #tpu.memory_space<vmem>>, vector<8x640xf32>,
    %c625_i32 = arith.constant 625 : i32
    %30 = tpu.dynamic_rotate %0 by %c625_i32 dim 1 : vector<8x640xf32>, i32 -> vector<8x640xf32>
    %c120 = arith.constant 120 : index
    %c0_17 = arith.constant 0 : index
    %31 = vector.load %arg6[%c120, %c0_17] : memref<200x640xf32, #tpu.memory_space<vmem>>, vector<8x640xf32>
    tpu.vector_store %arg6[%c120, %c0_17], %30 {strides = array<i32>} : memref<200x640xf32, #tpu.memory_space<vmem>>, vector<8x640xf32>,
    %c624_i32 = arith.constant 624 : i32
    %32 = tpu.dynamic_rotate %0 by %c624_i32 dim 1 : vector<8x640xf32>, i32 -> vector<8x640xf32>
    %c128 = arith.constant 128 : index
    %c0_18 = arith.constant 0 : index
    %33 = vector.load %arg6[%c128, %c0_18] : memref<200x640xf32, #tpu.memory_space<vmem>>, vector<8x640xf32>
    tpu.vector_store %arg6[%c128, %c0_18], %32 {strides = array<i32>} : memref<200x640xf32, #tpu.memory_space<vmem>>, vector<8x640xf32>,
    %c623_i32 = arith.constant 623 : i32
    %34 = tpu.dynamic_rotate %0 by %c623_i32 dim 1 : vector<8x640xf32>, i32 -> vector<8x640xf32>
    %c136 = arith.constant 136 : index
    %c0_19 = arith.constant 0 : index
    %35 = vector.load %arg6[%c136, %c0_19] : memref<200x640xf32, #tpu.memory_space<vmem>>, vector<8x640xf32>
    tpu.vector_store %arg6[%c136, %c0_19], %34 {strides = array<i32>} : memref<200x640xf32, #tpu.memory_space<vmem>>, vector<8x640xf32>,
    %c622_i32 = arith.constant 622 : i32
    %36 = tpu.dynamic_rotate %0 by %c622_i32 dim 1 : vector<8x640xf32>, i32 -> vector<8x640xf32>
    %c144 = arith.constant 144 : index
    %c0_20 = arith.constant 0 : index
    %37 = vector.load %arg6[%c144, %c0_20] : memref<200x640xf32, #tpu.memory_space<vmem>>, vector<8x640xf32>
    tpu.vector_store %arg6[%c144, %c0_20], %36 {strides = array<i32>} : memref<200x640xf32, #tpu.memory_space<vmem>>, vector<8x640xf32>,
    %c621_i32 = arith.constant 621 : i32
    %38 = tpu.dynamic_rotate %0 by %c621_i32 dim 1 : vector<8x640xf32>, i32 -> vector<8x640xf32>
    %c152 = arith.constant 152 : index
    %c0_21 = arith.constant 0 : index
    %39 = vector.load %arg6[%c152, %c0_21] : memref<200x640xf32, #tpu.memory_space<vmem>>, vector<8x640xf32>
    tpu.vector_store %arg6[%c152, %c0_21], %38 {strides = array<i32>} : memref<200x640xf32, #tpu.memory_space<vmem>>, vector<8x640xf32>,
    %c620_i32 = arith.constant 620 : i32
    %40 = tpu.dynamic_rotate %0 by %c620_i32 dim 1 : vector<8x640xf32>, i32 -> vector<8x640xf32>
    %c160 = arith.constant 160 : index
    %c0_22 = arith.constant 0 : index
    %41 = vector.load %arg6[%c160, %c0_22] : memref<200x640xf32, #tpu.memory_space<vmem>>, vector<8x640xf32>
    tpu.vector_store %arg6[%c160, %c0_22], %40 {strides = array<i32>} : memref<200x640xf32, #tpu.memory_space<vmem>>, vector<8x640xf32>,
    %c619_i32 = arith.constant 619 : i32
    %42 = tpu.dynamic_rotate %0 by %c619_i32 dim 1 : vector<8x640xf32>, i32 -> vector<8x640xf32>
    %c168 = arith.constant 168 : index
    %c0_23 = arith.constant 0 : index
    %43 = vector.load %arg6[%c168, %c0_23] : memref<200x640xf32, #tpu.memory_space<vmem>>, vector<8x640xf32>
    tpu.vector_store %arg6[%c168, %c0_23], %42 {strides = array<i32>} : memref<200x640xf32, #tpu.memory_space<vmem>>, vector<8x640xf32>,
    %c618_i32 = arith.constant 618 : i32
    %44 = tpu.dynamic_rotate %0 by %c618_i32 dim 1 : vector<8x640xf32>, i32 -> vector<8x640xf32>
    %c176 = arith.constant 176 : index
    %c0_24 = arith.constant 0 : index
    %45 = vector.load %arg6[%c176, %c0_24] : memref<200x640xf32, #tpu.memory_space<vmem>>, vector<8x640xf32>
    tpu.vector_store %arg6[%c176, %c0_24], %44 {strides = array<i32>} : memref<200x640xf32, #tpu.memory_space<vmem>>, vector<8x640xf32>,
    %c617_i32 = arith.constant 617 : i32
    %46 = tpu.dynamic_rotate %0 by %c617_i32 dim 1 : vector<8x640xf32>, i32 -> vector<8x640xf32>
    %c184 = arith.constant 184 : index
    %c0_25 = arith.constant 0 : index
    %47 = vector.load %arg6[%c184, %c0_25] : memref<200x640xf32, #tpu.memory_space<vmem>>, vector<8x640xf32>
    tpu.vector_store %arg6[%c184, %c0_25], %46 {strides = array<i32>} : memref<200x640xf32, #tpu.memory_space<vmem>>, vector<8x640xf32>,
    %c616_i32 = arith.constant 616 : i32
    %48 = tpu.dynamic_rotate %0 by %c616_i32 dim 1 : vector<8x640xf32>, i32 -> vector<8x640xf32>
    %c192 = arith.constant 192 : index
    %c0_26 = arith.constant 0 : index
    %49 = vector.load %arg6[%c192, %c0_26] : memref<200x640xf32, #tpu.memory_space<vmem>>, vector<8x640xf32>
    tpu.vector_store %arg6[%c192, %c0_26], %48 {strides = array<i32>} : memref<200x640xf32, #tpu.memory_space<vmem>>, vector<8x640xf32>,
    %c0_27 = arith.constant 0 : index
    %c0_28 = arith.constant 0 : index
    %50 = vector.load %arg2[%c0_27, %c0_28] : memref<20x200xf32, #tpu.memory_space<vmem>>, vector<20x200xf32>
    %c0_29 = arith.constant 0 : index
    %c0_30 = arith.constant 0 : index
    %51 = vector.load %arg6[%c0_29, %c0_30] : memref<200x640xf32, #tpu.memory_space<vmem>>, vector<200x640xf32>
    %cst = arith.constant dense<0.000000e+00> : vector<20x640xf32>
    %52 = tpu.matmul %50, %51, %cst {dimension_numbers = #tpu.dot_dimension_numbers<[1], [0], [0], [1], [0, 0, 1, 1], [], []>} : vector<20x200xf32>, vector<200x640xf32>, vector<20x640xf32> -> vector<20x640xf32>
    %c0_31 = arith.constant 0 : index
    %c0_32 = arith.constant 0 : index
    %53 = vector.load %arg3[%c0_31, %c0_32] : memref<20x1xf32, #tpu.memory_space<vmem>>, vector<20x1xf32>
    %54 = vector.broadcast %53 : vector<20x1xf32> to vector<20x640xf32>
    %55 = arith.addf %52, %54 : vector<20x640xf32>
    %56 = vector.extract_strided_slice %55 {offsets = [0, 0], sizes = [20, 160], strides = [1, 1]} : vector<20x640xf32> to vector<20x160xf32>
    %57 = arith.mulf %56, %56 : vector<20x160xf32>
    %c0_33 = arith.constant 0 : index
    %c0_34 = arith.constant 0 : index
    %58 = vector.load %arg7[%c0_33, %c0_34] : memref<80x160xf32, #tpu.memory_space<vmem>>, vector<20x160xf32>
    tpu.vector_store %arg7[%c0_33, %c0_34], %57 {strides = array<i32>} : memref<80x160xf32, #tpu.memory_space<vmem>>, vector<20x160xf32>,
    %59 = vector.extract_strided_slice %55 {offsets = [0, 160], sizes = [20, 160], strides = [1, 1]} : vector<20x640xf32> to vector<20x160xf32>
    %60 = arith.mulf %59, %59 : vector<20x160xf32>
    %c20 = arith.constant 20 : index
    %c0_35 = arith.constant 0 : index
    %61 = vector.load %arg7[%c20, %c0_35] : memref<80x160xf32, #tpu.memory_space<vmem>>, vector<20x160xf32>
    tpu.vector_store %arg7[%c20, %c0_35], %60 {strides = array<i32>} : memref<80x160xf32, #tpu.memory_space<vmem>>, vector<20x160xf32>,
    %62 = vector.extract_strided_slice %55 {offsets = [0, 320], sizes = [20, 160], strides = [1, 1]} : vector<20x640xf32> to vector<20x160xf32>
    %63 = arith.mulf %62, %62 : vector<20x160xf32>
    %c40_36 = arith.constant 40 : index
    %c0_37 = arith.constant 0 : index
    %64 = vector.load %arg7[%c40_36, %c0_37] : memref<80x160xf32, #tpu.memory_space<vmem>>, vector<20x160xf32>
    tpu.vector_store %arg7[%c40_36, %c0_37], %63 {strides = array<i32>} : memref<80x160xf32, #tpu.memory_space<vmem>>, vector<20x160xf32>,
    %65 = vector.extract_strided_slice %55 {offsets = [0, 480], sizes = [20, 160], strides = [1, 1]} : vector<20x640xf32> to vector<20x160xf32>
    %66 = arith.mulf %65, %65 : vector<20x160xf32>
    %c60 = arith.constant 60 : index
    %c0_38 = arith.constant 0 : index
    %67 = vector.load %arg7[%c60, %c0_38] : memref<80x160xf32, #tpu.memory_space<vmem>>, vector<20x160xf32>
    tpu.vector_store %arg7[%c60, %c0_38], %66 {strides = array<i32>} : memref<80x160xf32, #tpu.memory_space<vmem>>, vector<20x160xf32>,
    %c0_39 = arith.constant 0 : index
    %c0_40 = arith.constant 0 : index
    %68 = vector.load %arg7[%c0_39, %c0_40] : memref<80x160xf32, #tpu.memory_space<vmem>>, vector<80x160xf32>
    %c0_41 = arith.constant 0 : index
    %c0_42 = arith.constant 0 : index
    %69 = vector.load %arg4[%c0_41, %c0_42] : memref<160x5xf32, #tpu.memory_space<vmem>>, vector<160x5xf32>
    %cst_43 = arith.constant dense<0.000000e+00> : vector<80x5xf32>
    %70 = tpu.matmul %68, %69, %cst_43 {dimension_numbers = #tpu.dot_dimension_numbers<[1], [0], [0], [1], [0, 0, 1, 1], [], []>} : vector<80x160xf32>, vector<160x5xf32>, vector<80x5xf32> -> vector<80x5xf32>
    %cst_44 = arith.constant 0.0133333337 : f32
    %71 = vector.broadcast %cst_44 : f32 to vector<80x5xf32>
    %72 = arith.mulf %70, %71 : vector<80x5xf32>
    %cst_45 = arith.constant 9.99999997E-7 : f32
    %73 = vector.broadcast %cst_45 : f32 to vector<80x5xf32>
    %74 = arith.maximumf %72, %73 : vector<80x5xf32>
    %75 = math.log %74 : vector<80x5xf32>
    %c0_46 = arith.constant 0 : index
    %c0_47 = arith.constant 0 : index
    %c0_48 = arith.constant 0 : index
    %76 = vector.load %arg5[%c0_46, %c0_47, %c0_48] : memref<1x80x5xf32, #tpu.memory_space<vmem>>, vector<1x80x5xf32>
    %77 = vector.shape_cast %76 : vector<1x80x5xf32> to vector<80x5xf32>
    %78 = vector.shape_cast %75 : vector<80x5xf32> to vector<1x80x5xf32>
    tpu.vector_store %arg5[%c0_46, %c0_47, %c0_48], %78 {strides = array<i32>} : memref<1x80x5xf32, #tpu.memory_space<vmem>>, vector<1x80x5xf32>,
    return
  }
  func.func @transform_0(%arg0: i32) -> (i32, i32) {
    %c0_i32 = arith.constant 0 : i32
    %c0_i32_0 = arith.constant 0 : i32
    return %c0_i32, %arg0 : i32, i32
  }
  func.func @transform_1(%arg0: i32) -> (i32, i32) {
    %c0_i32 = arith.constant 0 : i32
    %c0_i32_0 = arith.constant 0 : i32
    %c0_i32_1 = arith.constant 0 : i32
    return %c0_i32, %c0_i32_0 : i32, i32
  }
  func.func @transform_2(%arg0: i32) -> (i32, i32) {
    %c0_i32 = arith.constant 0 : i32
    %c0_i32_0 = arith.constant 0 : i32
    %c0_i32_1 = arith.constant 0 : i32
    return %c0_i32, %c0_i32_0 : i32, i32
  }
  func.func @transform_3(%arg0: i32) -> (i32, i32) {
    %c0_i32 = arith.constant 0 : i32
    %c0_i32_0 = arith.constant 0 : i32
    %c0_i32_1 = arith.constant 0 : i32
    return %c0_i32, %c0_i32_0 : i32, i32
  }
  func.func @transform_4(%arg0: i32) -> (i32, i32, i32) {
    %c0_i32 = arith.constant 0 : i32
    %c0_i32_0 = arith.constant 0 : i32
    %c0_i32_1 = arith.constant 0 : i32
    return %arg0, %c0_i32, %c0_i32_0 : i32, i32, i32
  }
}

</mosaic_0001>

<llo_original>
// kernel: tpu_custom_call.1
$region0: #{tpu_custom_call.1}
  #allocation0 [shape = 'u32[]', space=smem, size = 0x4, offset = 0x4, fixed_abs, tag = 'smem constant byte address 0x4 - core index']
  #allocation1 [shape = 'u32[144,128]{1,0:T(1,128)}', space=vmem, size = 0x12000, scoped, tag = 'internal scratch']
  #allocation2 [shape = 'f32[200,640]{1,0:T(8,128)}', space=vmem, size = 0x7d000, scoped, tag = 'scratch operand']
  #allocation3 [shape = 'f32[80,160]{1,0:T(8,128)}', space=vmem, size = 0x14000, scoped, tag = 'scratch operand']
  %s0 = inlined_call_operand.vmem [shape: f32[8,1280], index: 0, kind: input, shape index: {}]
  %s1 = inlined_call_operand.vmem [shape: f32[20,200], index: 1, kind: input, shape index: {}]
  %s2 = inlined_call_operand.vmem [shape: f32[20,1], index: 2, kind: input, shape index: {}]
  %s3 = inlined_call_operand.vmem [shape: f32[160,5], index: 3, kind: input, shape index: {}]
  %s4 = inlined_call_operand.vmem [shape: f32[2,80,5], index: 4, kind: output, shape index: {}]
  %s5 = sld [smem:[#allocation0]]
  $region49: #{tpu_custom_call.1} parent=0
    _
  %s7 = ssub.s32 1, %s5
  %s8 = scalar_select 0, %s7, %s5
  loop: start=0, step=1, limit=4
  $region2: #{tpu_custom_call.1} parent=0 // loop_pre_header
    _
  $region3: #{tpu_custom_call.1} parent=0 // loop_header
    %s10 = sphi 0, %s14
    %p11 = scmp.ge.s32.totalorder %s10, 4
    %s20 = sphi 0, %s22
    %s23 = sphi 0, %s20
    %s24 = sphi 0, %s23
    %s40 = sphi 0, %s24
    %s44 = sphi 0, %s44
    %s46 = sphi 0, %s44
    %s47 = sphi 0, %s46
    %s61 = sphi 0, %s47
    %s65 = sphi 0, %s65
    %s67 = sphi 0, %s65
    %s68 = sphi 0, %s67
    %s82 = sphi 0, %s68
    %s86 = sphi 0, %s86
    %s88 = sphi 0, %s86
    %s89 = sphi 0, %s88
    %s103 = sphi 0, %s89
    %s109 = sphi 0, %s111
    %s112 = sphi 0, %s109
    %s113 = sphi 0, %s112
    %s129 = sphi 0, %s113
  $region4: #{tpu_custom_call.1} parent=0 // loop_header_branch
    %13 = sbr.rel (%p11) target = $region8
  $region5: #{tpu_custom_call.1} parent=0 // loop_body
    %s15 = ssub.s32 %s10, 1
    %s16 = ssub.s32 %s10, 2
    %s17 = sadd.s32 %s10, 1
    %s18 = ssub.s32 %s10, %s17
    %p19 = scmp.eq.s32.totalorder %s18, 0
    %s21 = sadd.s32 %s20, 1
    %s22 = scalar_select %p19, %s20, %s21
    %p25 = pneg %p19
    %p26 = scmp.eq.s32.totalorder %s10, 1
    %p27 = por %p25, %p26
    %p28 = scmp.ne.s32.totalorder %s20, %s23
    %p29 = scmp.eq.s32.totalorder %s10, 0
    %p30 = por %p28, %p29
    %p31 = scmp.ne.s32.totalorder %s20, %s23
    %p32 = scmp.eq.s32.totalorder %s15, 1
    %p33 = por %p31, %p32
    %p34 = scmp.ne.s32.totalorder %s23, %s24
    %p35 = scmp.eq.s32.totalorder %s15, 0
    %p36 = por %p34, %p35
    %p37 = scmp.ne.s32.totalorder %s23, %s24
    %p38 = scmp.eq.s32.totalorder %s16, 1
    %p39 = por %p37, %p38
    %p41 = scmp.ne.s32.totalorder %s24, %s40
    %p42 = scmp.eq.s32.totalorder %s16, 0
    %p43 = por %p41, %p42
    %s45 = sadd.s32 %s44, 1
    %p48 = scmp.eq.s32.totalorder %s10, 1
    %p49 = scmp.ne.s32.totalorder %s44, %s46
    %p50 = scmp.eq.s32.totalorder %s10, 0
    %p51 = por %p49, %p50
    %p52 = scmp.ne.s32.totalorder %s44, %s46
    %p53 = scmp.eq.s32.totalorder %s15, 1
    %p54 = por %p52, %p53
    %p55 = scmp.ne.s32.totalorder %s46, %s47
    %p56 = scmp.eq.s32.totalorder %s15, 0
    %p57 = por %p55, %p56
    %p58 = scmp.ne.s32.totalorder %s46, %s47
    %p59 = scmp.eq.s32.totalorder %s16, 1
    %p60 = por %p58, %p59
    %p62 = scmp.ne.s32.totalorder %s47, %s61
    %p63 = scmp.eq.s32.totalorder %s16, 0
    %p64 = por %p62, %p63
    %s66 = sadd.s32 %s65, 1
    %p69 = scmp.eq.s32.totalorder %s10, 1
    %p70 = scmp.ne.s32.totalorder %s65, %s67
    %p71 = scmp.eq.s32.totalorder %s10, 0
    %p72 = por %p70, %p71
    %p73 = scmp.ne.s32.totalorder %s65, %s67
    %p74 = scmp.eq.s32.totalorder %s15, 1
    %p75 = por %p73, %p74
    %p76 = scmp.ne.s32.totalorder %s67, %s68
    %p77 = scmp.eq.s32.totalorder %s15, 0
    %p78 = por %p76, %p77
    %p79 = scmp.ne.s32.totalorder %s67, %s68
    %p80 = scmp.eq.s32.totalorder %s16, 1
    %p81 = por %p79, %p80
    %p83 = scmp.ne.s32.totalorder %s68, %s82
    %p84 = scmp.eq.s32.totalorder %s16, 0
    %p85 = por %p83, %p84
    %s87 = sadd.s32 %s86, 1
    %p90 = scmp.eq.s32.totalorder %s10, 1
    %p91 = scmp.ne.s32.totalorder %s86, %s88
    %p92 = scmp.eq.s32.totalorder %s10, 0
    %p93 = por %p91, %p92
    %p94 = scmp.ne.s32.totalorder %s86, %s88
    %p95 = scmp.eq.s32.totalorder %s15, 1
    %p96 = por %p94, %p95
    %p97 = scmp.ne.s32.totalorder %s88, %s89
    %p98 = scmp.eq.s32.totalorder %s15, 0
    %p99 = por %p97, %p98
    %p100 = scmp.ne.s32.totalorder %s88, %s89
    %p101 = scmp.eq.s32.totalorder %s16, 1
    %p102 = por %p100, %p101
    %p104 = scmp.ne.s32.totalorder %s89, %s103
    %p105 = scmp.eq.s32.totalorder %s16, 0
    %p106 = por %p104, %p105
    %s107 = ssub.s32 %s10, %s17
    %p108 = scmp.eq.s32.totalorder %s107, 0
    %s110 = sadd.s32 %s109, 1
    %s111 = scalar_select %p108, %s109, %s110
    %p114 = pneg %p108
    %p115 = scmp.eq.s32.totalorder %s10, 1
    %p116 = por %p114, %p115
    %p117 = scmp.ne.s32.totalorder %s109, %s112
    %p118 = scmp.eq.s32.totalorder %s10, 0
    %p119 = por %p117, %p118
    %p120 = scmp.ne.s32.totalorder %s109, %s112
    %p121 = scmp.eq.s32.totalorder %s15, 1
    %p122 = por %p120, %p121
    %p123 = scmp.ne.s32.totalorder %s112, %s113
    %p124 = scmp.eq.s32.totalorder %s15, 0
    %p125 = por %p123, %p124
    %p126 = scmp.ne.s32.totalorder %s112, %s113
    %p127 = scmp.eq.s32.totalorder %s16, 1
    %p128 = por %p126, %p127
    %p130 = scmp.ne.s32.totalorder %s113, %s129
    %p131 = scmp.eq.s32.totalorder %s16, 0
    %p132 = por %p130, %p131
    %p133 = scmp.le.s32.totalorder 1, %s10
    %p134 = scmp.lt.s32.totalorder %s10, 3
    %p135 = pnand %p133, %p134
    %p136 = pneg %p135
    // Predicated region
    $region9: #{tpu_custom_call.1} parent=5 // pred_check
      _
    $region10: #{tpu_custom_call.1} parent=5 // pred_check_branch
      %138 = sbr.rel (%p135) target = $region12
    $region11: #{tpu_custom_call.1} parent=5 // pred_region
      %s139 = ssub.s32 %s10, 1
      // Predicated region
      $region13: #{tpu_custom_call.1} parent=11 // pred_check
        %p140 = pneg %p57
      $region14: #{tpu_custom_call.1} parent=11 // pred_check_branch
        %142 = sbr.rel (%p140) target = $region16
      $region15: #{tpu_custom_call.1} parent=11 // pred_region
        _
      $region16: #{tpu_custom_call.1} parent=11 // pred_fallthru
        _
      // Predicated region
      $region17: #{tpu_custom_call.1} parent=11 // pred_check
        %p143 = pneg %p78
      $region18: #{tpu_custom_call.1} parent=11 // pred_check_branch
        %145 = sbr.rel (%p143) target = $region20
      $region19: #{tpu_custom_call.1} parent=11 // pred_region
        _
      $region20: #{tpu_custom_call.1} parent=11 // pred_fallthru
        _
      // Predicated region
      $region21: #{tpu_custom_call.1} parent=11 // pred_check
        %p146 = pneg %p99
      $region22: #{tpu_custom_call.1} parent=11 // pred_check_branch
        %148 = sbr.rel (%p146) target = $region24
      $region23: #{tpu_custom_call.1} parent=11 // pred_region
        _
      $region24: #{tpu_custom_call.1} parent=11 // pred_fallthru
        _
    $region12: #{tpu_custom_call.1} parent=5 // pred_fallthru
      _
    %p149 = scmp.lt.s32.totalorder %s10, 2
    // Predicated region
    $region25: #{tpu_custom_call.1} parent=5 // pred_check
      %p150 = pneg %p149
    $region26: #{tpu_custom_call.1} parent=5 // pred_check_branch
      %152 = sbr.rel (%p150) target = $region28
    $region27: #{tpu_custom_call.1} parent=5 // pred_region
      // Predicated region
      $region29: #{tpu_custom_call.1} parent=27 // pred_check
        %p153 = pneg %p30
      $region30: #{tpu_custom_call.1} parent=27 // pred_check_branch
        %155 = sbr.rel (%p153) target = $region32
      $region31: #{tpu_custom_call.1} parent=27 // pred_region
        %s156 = smul.u32 5, %s10
        %p157 = scmp.lt.s32.totalorder %s156, 9
        %s158 = scalar_select %p157, %s156, 9
        %s159 = smul.addr %s158, 8
        %s160 = scalar_lea.vmem %s0, %s159
        %s161 = smul.u32 5, %s10
      $region32: #{tpu_custom_call.1} parent=27 // pred_fallthru
        _
    $region28: #{tpu_custom_call.1} parent=5 // pred_fallthru
      _
    %p162 = scmp.le.s32.totalorder 1, %s10
    %p163 = scmp.lt.s32.totalorder %s10, 3
    %p164 = pnand %p162, %p163
    %p165 = pneg %p164
    // Predicated region
    $region33: #{tpu_custom_call.1} parent=5 // pred_check
      _
    $region34: #{tpu_custom_call.1} parent=5 // pred_check_branch
      %167 = sbr.rel (%p164) target = $region36
    $region35: #{tpu_custom_call.1} parent=5 // pred_region
      %s168 = ssub.s32 %s10, 1
      %s169 = smul.u32 5, %s15
      %p170 = scmp.lt.s32.totalorder %s169, 9
      %s171 = scalar_select %p170, %s169, 9
      %s172 = smul.addr %s171, 8
      %s173 = scalar_lea.vmem %s0, %s172
      %p174 = pneg %p36
      %p175 = pneg %p33
      %p176 = pneg %p57
      %p177 = pneg %p54
      %p178 = pneg %p78
      %p179 = pneg %p75
      %p180 = pneg %p99
      %p181 = pneg %p96
      %p182 = pneg %p125
      %p183 = pneg %p122
      %p184 = scmp.lt.s32.totalorder %s15, 1
      %s185 = scalar_select %p184, %s15, 1
      %s186 = smul.addr %s185, 10
      %s187 = smul.addr %s186, 8
      %s188 = scalar_lea.vmem %s4, %s187
      %s189 = smul.u32 5, %s15
      %p190 = scmp.lt.s32.totalorder %s189, 9
      %s191 = scalar_select %p190, %s189, 9
      %s192 = smul.addr %s191, 8
      %s193 = scalar_lea.vmem %s0, %s192
      %s194 = smul.u32 5, %s15
      %p195 = scmp.lt.s32.totalorder %s15, 1
      %s196 = scalar_select %p195, %s15, 1
      %s197 = smul.addr %s196, 10
      %s198 = smul.addr %s197, 8
      %s199 = scalar_lea.vmem %s4, %s198
      %v200 = vld [vmem:[%s193] sm:$0xff]
      %v201 = vld [vmem:[%s193 + $0x8] sm:$0xff]
      %v202 = vld [vmem:[%s193 + $0x10] sm:$0xff]
      %v203 = vld [vmem:[%s193 + $0x18] sm:$0xff]
      %v204 = vld [vmem:[%s193 + $0x20] sm:$0xff]
      %205 = vst [vmem:[#allocation2] sm:$0xff] %v200
      %206 = vst [vmem:[#allocation2 + $0x8] sm:$0xff] %v201
      %207 = vst [vmem:[#allocation2 + $0x10] sm:$0xff] %v202
      %208 = vst [vmem:[#allocation2 + $0x18] sm:$0xff] %v203
      %209 = vst [vmem:[#allocation2 + $0x20] sm:$0xff] %v204
      %210 = vrot.lane.b32.xlu0 %v200, 127
      %v211 = vpop.permute.xlu0 %210
      %212 = vrot.lane.b32.xlu0 %v201, 127
      %v213 = vpop.permute.xlu0 %212
      %214 = vrot.lane.b32.xlu0 %v202, 127
      %v215 = vpop.permute.xlu0 %214
      %216 = vrot.lane.b32.xlu0 %v203, 127
      %v217 = vpop.permute.xlu0 %216
      %218 = vrot.lane.b32.xlu0 %v204, 127
      %v219 = vpop.permute.xlu0 %218
      %v220 = vlaneseq
      %v221 = vand.u32 %v220, 127
      %vm222 = vcmp.lt.s32.totalorder %v221, 127
      %v223 = vsel %vm222, %v217, %v219
      %v224 = vsel %vm222, %v215, %v217
      %v225 = vsel %vm222, %v213, %v215
      %v226 = vsel %vm222, %v211, %v213
      %v227 = vsel %vm222, %v219, %v211
      %228 = vst [vmem:[#allocation2 + $0x28] sm:$0xff] %v226
      %229 = vst [vmem:[#allocation2 + $0x30] sm:$0xff] %v225
      %230 = vst [vmem:[#allocation2 + $0x38] sm:$0xff] %v224
      %231 = vst [vmem:[#allocation2 + $0x40] sm:$0xff] %v223
      %232 = vst [vmem:[#allocation2 + $0x48] sm:$0xff] %v227
      %233 = vrot.lane.b32.xlu0 %v200, 126
      %v234 = vpop.permute.xlu0 %233
      %235 = vrot.lane.b32.xlu0 %v201, 126
      %v236 = vpop.permute.xlu0 %235
      %237 = vrot.lane.b32.xlu0 %v202, 126
      %v238 = vpop.permute.xlu0 %237
      %239 = vrot.lane.b32.xlu0 %v203, 126
      %v240 = vpop.permute.xlu0 %239
      %241 = vrot.lane.b32.xlu0 %v204, 126
      %v242 = vpop.permute.xlu0 %241
      %vm243 = vcmp.lt.s32.totalorder %v221, 126
      %v244 = vsel %vm243, %v240, %v242
      %v245 = vsel %vm243, %v238, %v240
      %v246 = vsel %vm243, %v236, %v238
      %v247 = vsel %vm243, %v234, %v236
      %v248 = vsel %vm243, %v242, %v234
      %249 = vst [vmem:[#allocation2 + $0x50] sm:$0xff] %v247
      %250 = vst [vmem:[#allocation2 + $0x58] sm:$0xff] %v246
      %251 = vst [vmem:[#allocation2 + $0x60] sm:$0xff] %v245
      %252 = vst [vmem:[#allocation2 + $0x68] sm:$0xff] %v244
      %253 = vst [vmem:[#allocation2 + $0x70] sm:$0xff] %v248
      %254 = vrot.lane.b32.xlu0 %v200, 125
      %v255 = vpop.permute.xlu0 %254
      %256 = vrot.lane.b32.xlu0 %v201, 125
      %v257 = vpop.permute.xlu0 %256
      %258 = vrot.lane.b32.xlu0 %v202, 125
      %v259 = vpop.permute.xlu0 %258
      %260 = vrot.lane.b32.xlu0 %v203, 125
      %v261 = vpop.permute.xlu0 %260
      %262 = vrot.lane.b32.xlu0 %v204, 125
      %v263 = vpop.permute.xlu0 %262
      %vm264 = vcmp.lt.s32.totalorder %v221, 125
      %v265 = vsel %vm264, %v261, %v263
      %v266 = vsel %vm264, %v259, %v261
      %v267 = vsel %vm264, %v257, %v259
      %v268 = vsel %vm264, %v255, %v257
      %v269 = vsel %vm264, %v263, %v255
      %270 = vst [vmem:[#allocation2 + $0x78] sm:$0xff] %v268
      %271 = vst [vmem:[#allocation2 + $0x80] sm:$0xff] %v267
      %272 = vst [vmem:[#allocation2 + $0x88] sm:$0xff] %v266
      %273 = vst [vmem:[#allocation2 + $0x90] sm:$0xff] %v265
      %274 = vst [vmem:[#allocation2 + $0x98] sm:$0xff] %v269
      %275 = vrot.lane.b32.xlu0 %v200, 124
      %v276 = vpop.permute.xlu0 %275
      %277 = vrot.lane.b32.xlu0 %v201, 124
      %v278 = vpop.permute.xlu0 %277
      %279 = vrot.lane.b32.xlu0 %v202, 124
      %v280 = vpop.permute.xlu0 %279
      %281 = vrot.lane.b32.xlu0 %v203, 124
      %v282 = vpop.permute.xlu0 %281
      %283 = vrot.lane.b32.xlu0 %v204, 124
      %v284 = vpop.permute.xlu0 %283
      %vm285 = vcmp.lt.s32.totalorder %v221, 124
      %v286 = vsel %vm285, %v282, %v284
      %v287 = vsel %vm285, %v280, %v282
      %v288 = vsel %vm285, %v278, %v280
      %v289 = vsel %vm285, %v276, %v278
      %v290 = vsel %vm285, %v284, %v276
      %291 = vst [vmem:[#allocation2 + $0xa0] sm:$0xff] %v289
      %292 = vst [vmem:[#allocation2 + $0xa8] sm:$0xff] %v288
      %293 = vst [vmem:[#allocation2 + $0xb0] sm:$0xff] %v287
      %294 = vst [vmem:[#allocation2 + $0xb8] sm:$0xff] %v286
      %295 = vst [vmem:[#allocation2 + $0xc0] sm:$0xff] %v290
      %296 = vrot.lane.b32.xlu0 %v200, 123
      %v297 = vpop.permute.xlu0 %296
      %298 = vrot.lane.b32.xlu0 %v201, 123
      %v299 = vpop.permute.xlu0 %298
      %300 = vrot.lane.b32.xlu0 %v202, 123
      %v301 = vpop.permute.xlu0 %300
      %302 = vrot.lane.b32.xlu0 %v203, 123
      %v303 = vpop.permute.xlu0 %302
      %304 = vrot.lane.b32.xlu0 %v204, 123
      %v305 = vpop.permute.xlu0 %304
      %vm306 = vcmp.lt.s32.totalorder %v221, 123
      %v307 = vsel %vm306, %v303, %v305
      %v308 = vsel %vm306, %v301, %v303
      %v309 = vsel %vm306, %v299, %v301
      %v310 = vsel %vm306, %v297, %v299
      %v311 = vsel %vm306, %v305, %v297
      %312 = vst [vmem:[#allocation2 + $0xc8] sm:$0xff] %v310
      %313 = vst [vmem:[#allocation2 + $0xd0] sm:$0xff] %v309
      %314 = vst [vmem:[#allocation2 + $0xd8] sm:$0xff] %v308
      %315 = vst [vmem:[#allocation2 + $0xe0] sm:$0xff] %v307
      %316 = vst [vmem:[#allocation2 + $0xe8] sm:$0xff] %v311
      %317 = vrot.lane.b32.xlu0 %v200, 122
      %v318 = vpop.permute.xlu0 %317
      %319 = vrot.lane.b32.xlu0 %v201, 122
      %v320 = vpop.permute.xlu0 %319
      %321 = vrot.lane.b32.xlu0 %v202, 122
      %v322 = vpop.permute.xlu0 %321
      %323 = vrot.lane.b32.xlu0 %v203, 122
      %v324 = vpop.permute.xlu0 %323
      %325 = vrot.lane.b32.xlu0 %v204, 122
      %v326 = vpop.permute.xlu0 %325
      %vm327 = vcmp.lt.s32.totalorder %v221, 122
      %v328 = vsel %vm327, %v324, %v326
      %v329 = vsel %vm327, %v322, %v324
      %v330 = vsel %vm327, %v320, %v322
      %v331 = vsel %vm327, %v318, %v320
      %v332 = vsel %vm327, %v326, %v318
      %333 = vst [vmem:[#allocation2 + $0xf0] sm:$0xff] %v331
      %334 = vst [vmem:[#allocation2 + $0xf8] sm:$0xff] %v330
      %335 = vst [vmem:[#allocation2 + $0x100] sm:$0xff] %v329
      %336 = vst [vmem:[#allocation2 + $0x108] sm:$0xff] %v328
      %337 = vst [vmem:[#allocation2 + $0x110] sm:$0xff] %v332
      %338 = vrot.lane.b32.xlu0 %v200, 121
      %v339 = vpop.permute.xlu0 %338
      %340 = vrot.lane.b32.xlu0 %v201, 121
      %v341 = vpop.permute.xlu0 %340
      %342 = vrot.lane.b32.xlu0 %v202, 121
      %v343 = vpop.permute.xlu0 %342
      %344 = vrot.lane.b32.xlu0 %v203, 121
      %v345 = vpop.permute.xlu0 %344
      %346 = vrot.lane.b32.xlu0 %v204, 121
      %v347 = vpop.permute.xlu0 %346
      %vm348 = vcmp.lt.s32.totalorder %v221, 121
      %v349 = vsel %vm348, %v345, %v347
      %v350 = vsel %vm348, %v343, %v345
      %v351 = vsel %vm348, %v341, %v343
      %v352 = vsel %vm348, %v339, %v341
      %v353 = vsel %vm348, %v347, %v339
      %354 = vst [vmem:[#allocation2 + $0x118] sm:$0xff] %v352
      %355 = vst [vmem:[#allocation2 + $0x120] sm:$0xff] %v351
      %356 = vst [vmem:[#allocation2 + $0x128] sm:$0xff] %v350
      %357 = vst [vmem:[#allocation2 + $0x130] sm:$0xff] %v349
      %358 = vst [vmem:[#allocation2 + $0x138] sm:$0xff] %v353
      %359 = vrot.lane.b32.xlu0 %v200, 120
      %v360 = vpop.permute.xlu0 %359
      %361 = vrot.lane.b32.xlu0 %v201, 120
      %v362 = vpop.permute.xlu0 %361
      %363 = vrot.lane.b32.xlu0 %v202, 120
      %v364 = vpop.permute.xlu0 %363
      %365 = vrot.lane.b32.xlu0 %v203, 120
      %v366 = vpop.permute.xlu0 %365
      %367 = vrot.lane.b32.xlu0 %v204, 120
      %v368 = vpop.permute.xlu0 %367
      %vm369 = vcmp.lt.s32.totalorder %v221, 120
      %v370 = vsel %vm369, %v366, %v368
      %v371 = vsel %vm369, %v364, %v366
      %v372 = vsel %vm369, %v362, %v364
      %v373 = vsel %vm369, %v360, %v362
      %v374 = vsel %vm369, %v368, %v360
      %375 = vst [vmem:[#allocation2 + $0x140] sm:$0xff] %v373
      %376 = vst [vmem:[#allocation2 + $0x148] sm:$0xff] %v372
      %377 = vst [vmem:[#allocation2 + $0x150] sm:$0xff] %v371
      %378 = vst [vmem:[#allocation2 + $0x158] sm:$0xff] %v370
      %379 = vst [vmem:[#allocation2 + $0x160] sm:$0xff] %v374
      %380 = vrot.lane.b32.xlu0 %v200, 119
      %v381 = vpop.permute.xlu0 %380
      %382 = vrot.lane.b32.xlu0 %v201, 119
      %v383 = vpop.permute.xlu0 %382
      %384 = vrot.lane.b32.xlu0 %v202, 119
      %v385 = vpop.permute.xlu0 %384
      %386 = vrot.lane.b32.xlu0 %v203, 119
      %v387 = vpop.permute.xlu0 %386
      %388 = vrot.lane.b32.xlu0 %v204, 119
      %v389 = vpop.permute.xlu0 %388
      %vm390 = vcmp.lt.s32.totalorder %v221, 119
      %v391 = vsel %vm390, %v387, %v389
      %v392 = vsel %vm390, %v385, %v387
      %v393 = vsel %vm390, %v383, %v385
      %v394 = vsel %vm390, %v381, %v383
      %v395 = vsel %vm390, %v389, %v381
      %396 = vst [vmem:[#allocation2 + $0x168] sm:$0xff] %v394
      %397 = vst [vmem:[#allocation2 + $0x170] sm:$0xff] %v393
      %398 = vst [vmem:[#allocation2 + $0x178] sm:$0xff] %v392
      %399 = vst [vmem:[#allocation2 + $0x180] sm:$0xff] %v391
      %400 = vst [vmem:[#allocation2 + $0x188] sm:$0xff] %v395
      %401 = vrot.lane.b32.xlu0 %v200, 118
      %v402 = vpop.permute.xlu0 %401
      %403 = vrot.lane.b32.xlu0 %v201, 118
      %v404 = vpop.permute.xlu0 %403
      %405 = vrot.lane.b32.xlu0 %v202, 118
      %v406 = vpop.permute.xlu0 %405
      %407 = vrot.lane.b32.xlu0 %v203, 118
      %v408 = vpop.permute.xlu0 %407
      %409 = vrot.lane.b32.xlu0 %v204, 118
      %v410 = vpop.permute.xlu0 %409
      %vm411 = vcmp.lt.s32.totalorder %v221, 118
      %v412 = vsel %vm411, %v408, %v410
      %v413 = vsel %vm411, %v406, %v408
      %v414 = vsel %vm411, %v404, %v406
      %v415 = vsel %vm411, %v402, %v404
      %v416 = vsel %vm411, %v410, %v402
      %417 = vst [vmem:[#allocation2 + $0x190] sm:$0xff] %v415
      %418 = vst [vmem:[#allocation2 + $0x198] sm:$0xff] %v414
      %419 = vst [vmem:[#allocation2 + $0x1a0] sm:$0xff] %v413
      %420 = vst [vmem:[#allocation2 + $0x1a8] sm:$0xff] %v412
      %421 = vst [vmem:[#allocation2 + $0x1b0] sm:$0xff] %v416
      %422 = vrot.lane.b32.xlu0 %v200, 117
      %v423 = vpop.permute.xlu0 %422
      %424 = vrot.lane.b32.xlu0 %v201, 117
      %v425 = vpop.permute.xlu0 %424
      %426 = vrot.lane.b32.xlu0 %v202, 117
      %v427 = vpop.permute.xlu0 %426
      %428 = vrot.lane.b32.xlu0 %v203, 117
      %v429 = vpop.permute.xlu0 %428
      %430 = vrot.lane.b32.xlu0 %v204, 117
      %v431 = vpop.permute.xlu0 %430
      %vm432 = vcmp.lt.s32.totalorder %v221, 117
      %v433 = vsel %vm432, %v429, %v431
      %v434 = vsel %vm432, %v427, %v429
      %v435 = vsel %vm432, %v425, %v427
      %v436 = vsel %vm432, %v423, %v425
      %v437 = vsel %vm432, %v431, %v423
      %438 = vst [vmem:[#allocation2 + $0x1b8] sm:$0xff] %v436
      %439 = vst [vmem:[#allocation2 + $0x1c0] sm:$0xff] %v435
      %440 = vst [vmem:[#allocation2 + $0x1c8] sm:$0xff] %v434
      %441 = vst [vmem:[#allocation2 + $0x1d0] sm:$0xff] %v433
      %442 = vst [vmem:[#allocation2 + $0x1d8] sm:$0xff] %v437
      %443 = vrot.lane.b32.xlu0 %v200, 116
      %v444 = vpop.permute.xlu0 %443
      %445 = vrot.lane.b32.xlu0 %v201, 116
      %v446 = vpop.permute.xlu0 %445
      %447 = vrot.lane.b32.xlu0 %v202, 116
      %v448 = vpop.permute.xlu0 %447
      %449 = vrot.lane.b32.xlu0 %v203, 116
      %v450 = vpop.permute.xlu0 %449
      %451 = vrot.lane.b32.xlu0 %v204, 116
      %v452 = vpop.permute.xlu0 %451
      %vm453 = vcmp.lt.s32.totalorder %v221, 116
      %v454 = vsel %vm453, %v450, %v452
      %v455 = vsel %vm453, %v448, %v450
      %v456 = vsel %vm453, %v446, %v448
      %v457 = vsel %vm453, %v444, %v446
      %v458 = vsel %vm453, %v452, %v444
      %459 = vst [vmem:[#allocation2 + $0x1e0] sm:$0xff] %v457
      %460 = vst [vmem:[#allocation2 + $0x1e8] sm:$0xff] %v456
      %461 = vst [vmem:[#allocation2 + $0x1f0] sm:$0xff] %v455
      %462 = vst [vmem:[#allocation2 + $0x1f8] sm:$0xff] %v454
      %463 = vst [vmem:[#allocation2 + $0x200] sm:$0xff] %v458
      %464 = vrot.lane.b32.xlu0 %v200, 115
      %v465 = vpop.permute.xlu0 %464
      %466 = vrot.lane.b32.xlu0 %v201, 115
      %v467 = vpop.permute.xlu0 %466
      %468 = vrot.lane.b32.xlu0 %v202, 115
      %v469 = vpop.permute.xlu0 %468
      %470 = vrot.lane.b32.xlu0 %v203, 115
      %v471 = vpop.permute.xlu0 %470
      %472 = vrot.lane.b32.xlu0 %v204, 115
      %v473 = vpop.permute.xlu0 %472
      %vm474 = vcmp.lt.s32.totalorder %v221, 115
      %v475 = vsel %vm474, %v471, %v473
      %v476 = vsel %vm474, %v469, %v471
      %v477 = vsel %vm474, %v467, %v469
      %v478 = vsel %vm474, %v465, %v467
      %v479 = vsel %vm474, %v473, %v465
      %480 = vst [vmem:[#allocation2 + $0x208] sm:$0xff] %v478
      %481 = vst [vmem:[#allocation2 + $0x210] sm:$0xff] %v477
      %482 = vst [vmem:[#allocation2 + $0x218] sm:$0xff] %v476
      %483 = vst [vmem:[#allocation2 + $0x220] sm:$0xff] %v475
      %484 = vst [vmem:[#allocation2 + $0x228] sm:$0xff] %v479
      %485 = vrot.lane.b32.xlu0 %v200, 114
      %v486 = vpop.permute.xlu0 %485
      %487 = vrot.lane.b32.xlu0 %v201, 114
      %v488 = vpop.permute.xlu0 %487
      %489 = vrot.lane.b32.xlu0 %v202, 114
      %v490 = vpop.permute.xlu0 %489
      %491 = vrot.lane.b32.xlu0 %v203, 114
      %v492 = vpop.permute.xlu0 %491
      %493 = vrot.lane.b32.xlu0 %v204, 114
      %v494 = vpop.permute.xlu0 %493
      %vm495 = vcmp.lt.s32.totalorder %v221, 114
      %v496 = vsel %vm495, %v492, %v494
      %v497 = vsel %vm495, %v490, %v492
      %v498 = vsel %vm495, %v488, %v490
      %v499 = vsel %vm495, %v486, %v488
      %v500 = vsel %vm495, %v494, %v486
      %501 = vst [vmem:[#allocation2 + $0x230] sm:$0xff] %v499
      %502 = vst [vmem:[#allocation2 + $0x238] sm:$0xff] %v498
      %503 = vst [vmem:[#allocation2 + $0x240] sm:$0xff] %v497
      %504 = vst [vmem:[#allocation2 + $0x248] sm:$0xff] %v496
      %505 = vst [vmem:[#allocation2 + $0x250] sm:$0xff] %v500
      %506 = vrot.lane.b32.xlu0 %v200, 113
      %v507 = vpop.permute.xlu0 %506
      %508 = vrot.lane.b32.xlu0 %v201, 113
      %v509 = vpop.permute.xlu0 %508
      %510 = vrot.lane.b32.xlu0 %v202, 113
      %v511 = vpop.permute.xlu0 %510
      %512 = vrot.lane.b32.xlu0 %v203, 113
      %v513 = vpop.permute.xlu0 %512
      %514 = vrot.lane.b32.xlu0 %v204, 113
      %v515 = vpop.permute.xlu0 %514
      %vm516 = vcmp.lt.s32.totalorder %v221, 113
      %v517 = vsel %vm516, %v513, %v515
      %v518 = vsel %vm516, %v511, %v513
      %v519 = vsel %vm516, %v509, %v511
      %v520 = vsel %vm516, %v507, %v509
      %v521 = vsel %vm516, %v515, %v507
      %522 = vst [vmem:[#allocation2 + $0x258] sm:$0xff] %v520
      %523 = vst [vmem:[#allocation2 + $0x260] sm:$0xff] %v519
      %524 = vst [vmem:[#allocation2 + $0x268] sm:$0xff] %v518
      %525 = vst [vmem:[#allocation2 + $0x270] sm:$0xff] %v517
      %526 = vst [vmem:[#allocation2 + $0x278] sm:$0xff] %v521
      %527 = vrot.lane.b32.xlu0 %v200, 112
      %v528 = vpop.permute.xlu0 %527
      %529 = vrot.lane.b32.xlu0 %v201, 112
      %v530 = vpop.permute.xlu0 %529
      %531 = vrot.lane.b32.xlu0 %v202, 112
      %v532 = vpop.permute.xlu0 %531
      %533 = vrot.lane.b32.xlu0 %v203, 112
      %v534 = vpop.permute.xlu0 %533
      %535 = vrot.lane.b32.xlu0 %v204, 112
      %v536 = vpop.permute.xlu0 %535
      %vm537 = vcmp.lt.s32.totalorder %v221, 112
      %v538 = vsel %vm537, %v534, %v536
      %v539 = vsel %vm537, %v532, %v534
      %v540 = vsel %vm537, %v530, %v532
      %v541 = vsel %vm537, %v528, %v530
      %v542 = vsel %vm537, %v536, %v528
      %543 = vst [vmem:[#allocation2 + $0x280] sm:$0xff] %v541
      %544 = vst [vmem:[#allocation2 + $0x288] sm:$0xff] %v540
      %545 = vst [vmem:[#allocation2 + $0x290] sm:$0xff] %v539
      %546 = vst [vmem:[#allocation2 + $0x298] sm:$0xff] %v538
      %547 = vst [vmem:[#allocation2 + $0x2a0] sm:$0xff] %v542
      %548 = vrot.lane.b32.xlu0 %v200, 111
      %v549 = vpop.permute.xlu0 %548
      %550 = vrot.lane.b32.xlu0 %v201, 111
      %v551 = vpop.permute.xlu0 %550
      %552 = vrot.lane.b32.xlu0 %v202, 111
      %v553 = vpop.permute.xlu0 %552
      %554 = vrot.lane.b32.xlu0 %v203, 111
      %v555 = vpop.permute.xlu0 %554
      %556 = vrot.lane.b32.xlu0 %v204, 111
      %v557 = vpop.permute.xlu0 %556
      %vm558 = vcmp.lt.s32.totalorder %v221, 111
      %v559 = vsel %vm558, %v555, %v557
      %v560 = vsel %vm558, %v553, %v555
      %v561 = vsel %vm558, %v551, %v553
      %v562 = vsel %vm558, %v549, %v551
      %v563 = vsel %vm558, %v557, %v549
      %564 = vst [vmem:[#allocation2 + $0x2a8] sm:$0xff] %v562
      %565 = vst [vmem:[#allocation2 + $0x2b0] sm:$0xff] %v561
      %566 = vst [vmem:[#allocation2 + $0x2b8] sm:$0xff] %v560
      %567 = vst [vmem:[#allocation2 + $0x2c0] sm:$0xff] %v559
      %568 = vst [vmem:[#allocation2 + $0x2c8] sm:$0xff] %v563
      %569 = vrot.lane.b32.xlu0 %v200, 110
      %v570 = vpop.permute.xlu0 %569
      %571 = vrot.lane.b32.xlu0 %v201, 110
      %v572 = vpop.permute.xlu0 %571
      %573 = vrot.lane.b32.xlu0 %v202, 110
      %v574 = vpop.permute.xlu0 %573
      %575 = vrot.lane.b32.xlu0 %v203, 110
      %v576 = vpop.permute.xlu0 %575
      %577 = vrot.lane.b32.xlu0 %v204, 110
      %v578 = vpop.permute.xlu0 %577
      %vm579 = vcmp.lt.s32.totalorder %v221, 110
      %v580 = vsel %vm579, %v576, %v578
      %v581 = vsel %vm579, %v574, %v576
      %v582 = vsel %vm579, %v572, %v574
      %v583 = vsel %vm579, %v570, %v572
      %v584 = vsel %vm579, %v578, %v570
      %585 = vst [vmem:[#allocation2 + $0x2d0] sm:$0xff] %v583
      %586 = vst [vmem:[#allocation2 + $0x2d8] sm:$0xff] %v582
      %587 = vst [vmem:[#allocation2 + $0x2e0] sm:$0xff] %v581
      %588 = vst [vmem:[#allocation2 + $0x2e8] sm:$0xff] %v580
      %589 = vst [vmem:[#allocation2 + $0x2f0] sm:$0xff] %v584
      %590 = vrot.lane.b32.xlu0 %v200, 109
      %v591 = vpop.permute.xlu0 %590
      %592 = vrot.lane.b32.xlu0 %v201, 109
      %v593 = vpop.permute.xlu0 %592
      %594 = vrot.lane.b32.xlu0 %v202, 109
      %v595 = vpop.permute.xlu0 %594
      %596 = vrot.lane.b32.xlu0 %v203, 109
      %v597 = vpop.permute.xlu0 %596
      %598 = vrot.lane.b32.xlu0 %v204, 109
      %v599 = vpop.permute.xlu0 %598
      %vm600 = vcmp.lt.s32.totalorder %v221, 109
      %v601 = vsel %vm600, %v597, %v599
      %v602 = vsel %vm600, %v595, %v597
      %v603 = vsel %vm600, %v593, %v595
      %v604 = vsel %vm600, %v591, %v593
      %v605 = vsel %vm600, %v599, %v591
      %606 = vst [vmem:[#allocation2 + $0x2f8] sm:$0xff] %v604
      %607 = vst [vmem:[#allocation2 + $0x300] sm:$0xff] %v603
      %608 = vst [vmem:[#allocation2 + $0x308] sm:$0xff] %v602
      %609 = vst [vmem:[#allocation2 + $0x310] sm:$0xff] %v601
      %610 = vst [vmem:[#allocation2 + $0x318] sm:$0xff] %v605
      %611 = vrot.lane.b32.xlu0 %v200, 108
      %v612 = vpop.permute.xlu0 %611
      %613 = vrot.lane.b32.xlu0 %v201, 108
      %v614 = vpop.permute.xlu0 %613
      %615 = vrot.lane.b32.xlu0 %v202, 108
      %v616 = vpop.permute.xlu0 %615
      %617 = vrot.lane.b32.xlu0 %v203, 108
      %v618 = vpop.permute.xlu0 %617
      %619 = vrot.lane.b32.xlu0 %v204, 108
      %v620 = vpop.permute.xlu0 %619
      %vm621 = vcmp.lt.s32.totalorder %v221, 108
      %v622 = vsel %vm621, %v618, %v620
      %v623 = vsel %vm621, %v616, %v618
      %v624 = vsel %vm621, %v614, %v616
      %v625 = vsel %vm621, %v612, %v614
      %v626 = vsel %vm621, %v620, %v612
      %627 = vst [vmem:[#allocation2 + $0x320] sm:$0xff] %v625
      %628 = vst [vmem:[#allocation2 + $0x328] sm:$0xff] %v624
      %629 = vst [vmem:[#allocation2 + $0x330] sm:$0xff] %v623
      %630 = vst [vmem:[#allocation2 + $0x338] sm:$0xff] %v622
      %631 = vst [vmem:[#allocation2 + $0x340] sm:$0xff] %v626
      %632 = vrot.lane.b32.xlu0 %v200, 107
      %v633 = vpop.permute.xlu0 %632
      %634 = vrot.lane.b32.xlu0 %v201, 107
      %v635 = vpop.permute.xlu0 %634
      %636 = vrot.lane.b32.xlu0 %v202, 107
      %v637 = vpop.permute.xlu0 %636
      %638 = vrot.lane.b32.xlu0 %v203, 107
      %v639 = vpop.permute.xlu0 %638
      %640 = vrot.lane.b32.xlu0 %v204, 107
      %v641 = vpop.permute.xlu0 %640
      %vm642 = vcmp.lt.s32.totalorder %v221, 107
      %v643 = vsel %vm642, %v639, %v641
      %v644 = vsel %vm642, %v637, %v639
      %v645 = vsel %vm642, %v635, %v637
      %v646 = vsel %vm642, %v633, %v635
      %v647 = vsel %vm642, %v641, %v633
      %648 = vst [vmem:[#allocation2 + $0x348] sm:$0xff] %v646
      %649 = vst [vmem:[#allocation2 + $0x350] sm:$0xff] %v645
      %650 = vst [vmem:[#allocation2 + $0x358] sm:$0xff] %v644
      %651 = vst [vmem:[#allocation2 + $0x360] sm:$0xff] %v643
      %652 = vst [vmem:[#allocation2 + $0x368] sm:$0xff] %v647
      %653 = vrot.lane.b32.xlu0 %v200, 106
      %v654 = vpop.permute.xlu0 %653
      %655 = vrot.lane.b32.xlu0 %v201, 106
      %v656 = vpop.permute.xlu0 %655
      %657 = vrot.lane.b32.xlu0 %v202, 106
      %v658 = vpop.permute.xlu0 %657
      %659 = vrot.lane.b32.xlu0 %v203, 106
      %v660 = vpop.permute.xlu0 %659
      %661 = vrot.lane.b32.xlu0 %v204, 106
      %v662 = vpop.permute.xlu0 %661
      %vm663 = vcmp.lt.s32.totalorder %v221, 106
      %v664 = vsel %vm663, %v660, %v662
      %v665 = vsel %vm663, %v658, %v660
      %v666 = vsel %vm663, %v656, %v658
      %v667 = vsel %vm663, %v654, %v656
      %v668 = vsel %vm663, %v662, %v654
      %669 = vst [vmem:[#allocation2 + $0x370] sm:$0xff] %v667
      %670 = vst [vmem:[#allocation2 + $0x378] sm:$0xff] %v666
      %671 = vst [vmem:[#allocation2 + $0x380] sm:$0xff] %v665
      %672 = vst [vmem:[#allocation2 + $0x388] sm:$0xff] %v664
      %673 = vst [vmem:[#allocation2 + $0x390] sm:$0xff] %v668
      %674 = vrot.lane.b32.xlu0 %v200, 105
      %v675 = vpop.permute.xlu0 %674
      %676 = vrot.lane.b32.xlu0 %v201, 105
      %v677 = vpop.permute.xlu0 %676
      %678 = vrot.lane.b32.xlu0 %v202, 105
      %v679 = vpop.permute.xlu0 %678
      %680 = vrot.lane.b32.xlu0 %v203, 105
      %v681 = vpop.permute.xlu0 %680
      %682 = vrot.lane.b32.xlu0 %v204, 105
      %v683 = vpop.permute.xlu0 %682
      %vm684 = vcmp.lt.s32.totalorder %v221, 105
      %v685 = vsel %vm684, %v681, %v683
      %v686 = vsel %vm684, %v679, %v681
      %v687 = vsel %vm684, %v677, %v679
      %v688 = vsel %vm684, %v675, %v677
      %v689 = vsel %vm684, %v683, %v675
      %690 = vst [vmem:[#allocation2 + $0x398] sm:$0xff] %v688
      %691 = vst [vmem:[#allocation2 + $0x3a0] sm:$0xff] %v687
      %692 = vst [vmem:[#allocation2 + $0x3a8] sm:$0xff] %v686
      %693 = vst [vmem:[#allocation2 + $0x3b0] sm:$0xff] %v685
      %694 = vst [vmem:[#allocation2 + $0x3b8] sm:$0xff] %v689
      %695 = vrot.lane.b32.xlu0 %v200, 104
      %v696 = vpop.permute.xlu0 %695
      %697 = vrot.lane.b32.xlu0 %v201, 104
      %v698 = vpop.permute.xlu0 %697
      %699 = vrot.lane.b32.xlu0 %v202, 104
      %v700 = vpop.permute.xlu0 %699
      %701 = vrot.lane.b32.xlu0 %v203, 104
      %v702 = vpop.permute.xlu0 %701
      %703 = vrot.lane.b32.xlu0 %v204, 104
      %v704 = vpop.permute.xlu0 %703
      %vm705 = vcmp.lt.s32.totalorder %v221, 104
      %v706 = vsel %vm705, %v702, %v704
      %v707 = vsel %vm705, %v700, %v702
      %v708 = vsel %vm705, %v698, %v700
      %v709 = vsel %vm705, %v696, %v698
      %v710 = vsel %vm705, %v704, %v696
      %711 = vst [vmem:[#allocation2 + $0x3c0] sm:$0xff] %v709
      %712 = vst [vmem:[#allocation2 + $0x3c8] sm:$0xff] %v708
      %713 = vst [vmem:[#allocation2 + $0x3d0] sm:$0xff] %v707
      %714 = vst [vmem:[#allocation2 + $0x3d8] sm:$0xff] %v706
      %715 = vst [vmem:[#allocation2 + $0x3e0] sm:$0xff] %v710
      %v716 = vld [vmem:[%s1] sm:$0xff]
      %v717 = vld [vmem:[%s1 + $0x8] sm:$0xff]
      %v718 = vld [vmem:[%s1 + $0x10] sm:$0xff]
      %v719 = vld [vmem:[%s1 + $0x18] sm:$0xff]
      %v720 = vld [vmem:[%s1 + $0x20] sm:$0xf]
      %v721 = vld [vmem:[%s1 + $0x28] sm:$0xf]
      %v722 = vld [vmem:[#allocation2] sm:$0xff]
      %v723 = vld [vmem:[#allocation2 + $0x8] sm:$0xff]
      %v724 = vld [vmem:[#allocation2 + $0x10] sm:$0xff]
      %v725 = vld [vmem:[#allocation2 + $0x18] sm:$0xff]
      %v726 = vld [vmem:[#allocation2 + $0x20] sm:$0xff]
      %v727 = vld [vmem:[#allocation2 + $0x28] sm:$0xff]
      %v728 = vld [vmem:[#allocation2 + $0x30] sm:$0xff]
      %v729 = vld [vmem:[#allocation2 + $0x38] sm:$0xff]
      %v730 = vld [vmem:[#allocation2 + $0x40] sm:$0xff]
      %v731 = vld [vmem:[#allocation2 + $0x48] sm:$0xff]
      %v732 = vld [vmem:[#allocation2 + $0x50] sm:$0xff]
      %v733 = vld [vmem:[#allocation2 + $0x58] sm:$0xff]
      %v734 = vld [vmem:[#allocation2 + $0x60] sm:$0xff]
      %v735 = vld [vmem:[#allocation2 + $0x68] sm:$0xff]
      %v736 = vld [vmem:[#allocation2 + $0x70] sm:$0xff]
      %v737 = vld [vmem:[#allocation2 + $0x78] sm:$0xff]
      %v738 = vld [vmem:[#allocation2 + $0x80] sm:$0xff]
      %v739 = vld [vmem:[#allocation2 + $0x88] sm:$0xff]
      %v740 = vld [vmem:[#allocation2 + $0x90] sm:$0xff]
      %v741 = vld [vmem:[#allocation2 + $0x98] sm:$0xff]
      %v742 = vld [vmem:[#allocation2 + $0xa0] sm:$0xff]
      %v743 = vld [vmem:[#allocation2 + $0xa8] sm:$0xff]
      %v744 = vld [vmem:[#allocation2 + $0xb0] sm:$0xff]
      %v745 = vld [vmem:[#allocation2 + $0xb8] sm:$0xff]
      %v746 = vld [vmem:[#allocation2 + $0xc0] sm:$0xff]
      %v747 = vld [vmem:[#allocation2 + $0xc8] sm:$0xff]
      %v748 = vld [vmem:[#allocation2 + $0xd0] sm:$0xff]
      %v749 = vld [vmem:[#allocation2 + $0xd8] sm:$0xff]
      %v750 = vld [vmem:[#allocation2 + $0xe0] sm:$0xff]
      %v751 = vld [vmem:[#allocation2 + $0xe8] sm:$0xff]
      %v752 = vld [vmem:[#allocation2 + $0xf0] sm:$0xff]
      %v753 = vld [vmem:[#allocation2 + $0xf8] sm:$0xff]
      %v754 = vld [vmem:[#allocation2 + $0x100] sm:$0xff]
      %v755 = vld [vmem:[#allocation2 + $0x108] sm:$0xff]
      %v756 = vld [vmem:[#allocation2 + $0x110] sm:$0xff]
      %v757 = vld [vmem:[#allocation2 + $0x118] sm:$0xff]
      %v758 = vld [vmem:[#allocation2 + $0x120] sm:$0xff]
      %v759 = vld [vmem:[#allocation2 + $0x128] sm:$0xff]
      %v760 = vld [vmem:[#allocation2 + $0x130] sm:$0xff]
      %v761 = vld [vmem:[#allocation2 + $0x138] sm:$0xff]
      %v762 = vld [vmem:[#allocation2 + $0x140] sm:$0xff]
      %v763 = vld [vmem:[#allocation2 + $0x148] sm:$0xff]
      %v764 = vld [vmem:[#allocation2 + $0x150] sm:$0xff]
      %v765 = vld [vmem:[#allocation2 + $0x158] sm:$0xff]
      %v766 = vld [vmem:[#allocation2 + $0x160] sm:$0xff]
      %v767 = vld [vmem:[#allocation2 + $0x168] sm:$0xff]
      %v768 = vld [vmem:[#allocation2 + $0x170] sm:$0xff]
      %v769 = vld [vmem:[#allocation2 + $0x178] sm:$0xff]
      %v770 = vld [vmem:[#allocation2 + $0x180] sm:$0xff]
      %v771 = vld [vmem:[#allocation2 + $0x188] sm:$0xff]
      %v772 = vld [vmem:[#allocation2 + $0x190] sm:$0xff]
      %v773 = vld [vmem:[#allocation2 + $0x198] sm:$0xff]
      %v774 = vld [vmem:[#allocation2 + $0x1a0] sm:$0xff]
      %v775 = vld [vmem:[#allocation2 + $0x1a8] sm:$0xff]
      %v776 = vld [vmem:[#allocation2 + $0x1b0] sm:$0xff]
      %v777 = vld [vmem:[#allocation2 + $0x1b8] sm:$0xff]
      %v778 = vld [vmem:[#allocation2 + $0x1c0] sm:$0xff]
      %v779 = vld [vmem:[#allocation2 + $0x1c8] sm:$0xff]
      %v780 = vld [vmem:[#allocation2 + $0x1d0] sm:$0xff]
      %v781 = vld [vmem:[#allocation2 + $0x1d8] sm:$0xff]
      %v782 = vld [vmem:[#allocation2 + $0x1e0] sm:$0xff]
      %v783 = vld [vmem:[#allocation2 + $0x1e8] sm:$0xff]
      %v784 = vld [vmem:[#allocation2 + $0x1f0] sm:$0xff]
      %v785 = vld [vmem:[#allocation2 + $0x1f8] sm:$0xff]
      %v786 = vld [vmem:[#allocation2 + $0x200] sm:$0xff]
      %v787 = vld [vmem:[#allocation2 + $0x208] sm:$0xff]
      %v788 = vld [vmem:[#allocation2 + $0x210] sm:$0xff]
      %v789 = vld [vmem:[#allocation2 + $0x218] sm:$0xff]
      %v790 = vld [vmem:[#allocation2 + $0x220] sm:$0xff]
      %v791 = vld [vmem:[#allocation2 + $0x228] sm:$0xff]
      %v792 = vld [vmem:[#allocation2 + $0x230] sm:$0xff]
      %v793 = vld [vmem:[#allocation2 + $0x238] sm:$0xff]
      %v794 = vld [vmem:[#allocation2 + $0x240] sm:$0xff]
      %v795 = vld [vmem:[#allocation2 + $0x248] sm:$0xff]
      %v796 = vld [vmem:[#allocation2 + $0x250] sm:$0xff]
      %v797 = vld [vmem:[#allocation2 + $0x258] sm:$0xff]
      %v798 = vld [vmem:[#allocation2 + $0x260] sm:$0xff]
      %v799 = vld [vmem:[#allocation2 + $0x268] sm:$0xff]
      %v800 = vld [vmem:[#allocation2 + $0x270] sm:$0xff]
      %v801 = vld [vmem:[#allocation2 + $0x278] sm:$0xff]
      %v802 = vld [vmem:[#allocation2 + $0x280] sm:$0xff]
      %v803 = vld [vmem:[#allocation2 + $0x288] sm:$0xff]
      %v804 = vld [vmem:[#allocation2 + $0x290] sm:$0xff]
      %v805 = vld [vmem:[#allocation2 + $0x298] sm:$0xff]
      %v806 = vld [vmem:[#allocation2 + $0x2a0] sm:$0xff]
      %v807 = vld [vmem:[#allocation2 + $0x2a8] sm:$0xff]
      %v808 = vld [vmem:[#allocation2 + $0x2b0] sm:$0xff]
      %v809 = vld [vmem:[#allocation2 + $0x2b8] sm:$0xff]
      %v810 = vld [vmem:[#allocation2 + $0x2c0] sm:$0xff]
      %v811 = vld [vmem:[#allocation2 + $0x2c8] sm:$0xff]
      %v812 = vld [vmem:[#allocation2 + $0x2d0] sm:$0xff]
      %v813 = vld [vmem:[#allocation2 + $0x2d8] sm:$0xff]
      %v814 = vld [vmem:[#allocation2 + $0x2e0] sm:$0xff]
      %v815 = vld [vmem:[#allocation2 + $0x2e8] sm:$0xff]
      %v816 = vld [vmem:[#allocation2 + $0x2f0] sm:$0xff]
      %v817 = vld [vmem:[#allocation2 + $0x2f8] sm:$0xff]
      %v818 = vld [vmem:[#allocation2 + $0x300] sm:$0xff]
      %v819 = vld [vmem:[#allocation2 + $0x308] sm:$0xff]
      %v820 = vld [vmem:[#allocation2 + $0x310] sm:$0xff]
      %v821 = vld [vmem:[#allocation2 + $0x318] sm:$0xff]
      %v822 = vld [vmem:[#allocation2 + $0x320] sm:$0xff]
      %v823 = vld [vmem:[#allocation2 + $0x328] sm:$0xff]
      %v824 = vld [vmem:[#allocation2 + $0x330] sm:$0xff]
      %v825 = vld [vmem:[#allocation2 + $0x338] sm:$0xff]
      %v826 = vld [vmem:[#allocation2 + $0x340] sm:$0xff]
      %v827 = vld [vmem:[#allocation2 + $0x348] sm:$0xff]
      %v828 = vld [vmem:[#allocation2 + $0x350] sm:$0xff]
      %v829 = vld [vmem:[#allocation2 + $0x358] sm:$0xff]
      %v830 = vld [vmem:[#allocation2 + $0x360] sm:$0xff]
      %v831 = vld [vmem:[#allocation2 + $0x368] sm:$0xff]
      %v832 = vld [vmem:[#allocation2 + $0x370] sm:$0xff]
      %v833 = vld [vmem:[#allocation2 + $0x378] sm:$0xff]
      %v834 = vld [vmem:[#allocation2 + $0x380] sm:$0xff]
      %v835 = vld [vmem:[#allocation2 + $0x388] sm:$0xff]
      %v836 = vld [vmem:[#allocation2 + $0x390] sm:$0xff]
      %v837 = vld [vmem:[#allocation2 + $0x398] sm:$0xff]
      %v838 = vld [vmem:[#allocation2 + $0x3a0] sm:$0xff]
      %v839 = vld [vmem:[#allocation2 + $0x3a8] sm:$0xff]
      %v840 = vld [vmem:[#allocation2 + $0x3b0] sm:$0xff]
      %v841 = vld [vmem:[#allocation2 + $0x3b8] sm:$0xff]
      %v842 = vld [vmem:[#allocation2 + $0x3c0] sm:$0xff]
      %v843 = vld [vmem:[#allocation2 + $0x3c8] sm:$0xff]
      %v844 = vld [vmem:[#allocation2 + $0x3d0] sm:$0xff]
      %v845 = vld [vmem:[#allocation2 + $0x3d8] sm:$0xff]
      %v846 = vld [vmem:[#allocation2 + $0x3e0] sm:$0xff]
      %v847 = vld [vmem:[%s2] sm:$0xff]
      %v848 = vld [vmem:[%s2 + $0x8] sm:$0xff]
      %v849 = vld [vmem:[%s2 + $0x10] sm:$0xf]
      %851 = vset.pattern.permute.xlu0 0
      %852 = vperm.xlu0 %851, %v847
      %v853 = vpop.permute.xlu0 %852
      %856 = vset.pattern.permute.xlu0 0
      %857 = vperm.xlu0 %856, %v848
      %v858 = vpop.permute.xlu0 %857
      %861 = vset.pattern.permute.xlu0 0
      %862 = vperm.xlu0 %861, %v849
      %v863 = vpop.permute.xlu0 %862
      %vm865 = vcmask 588800
      %v867 = vsel %vm865, %v717, 0
      %v870 = vsel %vm865, %v719, 0
      %v873 = vsel %vm865, %v721, 0
      %875 = vmatprep.subr.mxu0 %v723
      %876 = vmatpush1.msra.mxu0 %v722
      %877 = vmatprep.subr.mxu0 %v728
      %878 = vmatpush1.msra.mxu0 %v727
      %879 = vmatprep.subr.mxu0 %v733
      %880 = vmatpush1.msra.mxu0 %v732
      %881 = vmatprep.subr.mxu0 %v738
      %882 = vmatpush1.msra.mxu0 %v737
      %883 = vmatprep.subr.mxu0 %v743
      %884 = vmatpush1.msra.mxu0 %v742
      %885 = vmatprep.subr.mxu0 %v748
      %886 = vmatpush1.msra.mxu0 %v747
      %887 = vmatprep.subr.mxu0 %v753
      %888 = vmatpush1.msra.mxu0 %v752
      %889 = vmatprep.subr.mxu0 %v758
      %890 = vmatpush1.msra.mxu0 %v757
      %891 = vmatprep.subr.mxu0 %v763
      %892 = vmatpush1.msra.mxu0 %v762
      %893 = vmatprep.subr.mxu0 %v768
      %894 = vmatpush1.msra.mxu0 %v767
      %895 = vmatprep.subr.mxu0 %v773
      %896 = vmatpush1.msra.mxu0 %v772
      %897 = vmatprep.subr.mxu0 %v778
      %898 = vmatpush1.msra.mxu0 %v777
      %899 = vmatprep.subr.mxu0 %v783
      %900 = vmatpush1.msra.mxu0 %v782
      %901 = vmatprep.subr.mxu0 %v788
      %902 = vmatpush1.msra.mxu0 %v787
      %903 = vmatprep.subr.mxu0 %v793
      %904 = vmatpush1.msra.mxu0 %v792
      %905 = vmatprep.subr.mxu0 %v798
      %906 = vmatpush1.msra.mxu0 %v797
      %907 = vmatprep.subr.mxu0 %v803
      %908 = vmatpush1.msra.mxu0 %v802
      %909 = vmatprep.subr.mxu0 %v808
      %910 = vmatpush1.msra.mxu0 %v807
      %911 = vmatprep.subr.mxu0 %v813
      %912 = vmatpush1.msra.mxu0 %v812
      %913 = vmatprep.subr.mxu0 %v818
      %914 = vmatpush1.msra.mxu0 %v817
      %915 = vmatprep.subr.mxu0 %v823
      %916 = vmatpush1.msra.mxu0 %v822
      %917 = vmatprep.subr.mxu0 %v828
      %918 = vmatpush1.msra.mxu0 %v827
      %919 = vmatprep.subr.mxu0 %v833
      %920 = vmatpush1.msra.mxu0 %v832
      %921 = vmatprep.subr.mxu0 %v838
      %922 = vmatpush1.msra.mxu0 %v837
      %923 = vmatprep.subr.mxu0 %v843
      %924 = vmatpush1.msra.mxu0 %v842
      %925 = vmatprep.subr.mxu0 0.0
      %926 = vmatpush1.msra.mxu0 0.0
      %927 = vmatprep.subr.mxu0 0.0
      %928 = vmatpush1.msra.mxu0 0.0
      %929 = vmatprep.subr.mxu0 0.0
      %930 = vmatpush1.msra.mxu0 0.0
      %931 = vmatprep.subr.mxu0 0.0
      %932 = vmatpush1.msra.mxu0 0.0
      %933 = vmatprep.subr.mxu0 0.0
      %934 = vmatpush1.msra.mxu0 0.0
      %935 = vmatprep.subr.mxu0 0.0
      %936 = vmatpush1.msra.mxu0 0.0
      %937 = vmatprep.subr.mxu0 0.0
      %938 = vmatpush1.msra.mxu0 0.0
      %939 = vmatprep.mubr.f32.mxu0 %v867
      %940 = vmatmul.mubr.f32.gmra.mrb[0].mxu0 %v716
      %v941 = vpop.f32.mrb[0].mxu0
      %v942 = vadd.f32 %v853, %v941
      %v943 = vpop.f32.mrb[0].mxu0
      %v944 = vadd.f32 %v853, %v943
      %945 = vmatprep.mubr.f32.mxu0 %v870
      %946 = vmatmul.mubr.f32.gmra.mrb[0].mxu0 %v718
      %v947 = vpop.f32.mrb[0].mxu0
      %v948 = vadd.f32 %v858, %v947
      %v949 = vpop.f32.mrb[0].mxu0
      %v950 = vadd.f32 %v858, %v949
      %951 = vmatprep.mubr.f32.mxu0 %v873
      %952 = vmatmul.mubr.f32.gmra.mrb[0].mxu0 %v720
      %v953 = vpop.f32.mrb[0].mxu0
      %v954 = vadd.f32 %v863, %v953
      %v955 = vpop.f32.mrb[0].mxu0
      %v956 = vadd.f32 %v863, %v955
      %957 = vdwg.mxu0
      %958 = vmatprep.subr.mxu0 %v725
      %959 = vmatpush1.msra.mxu0 %v724
      %960 = vmatprep.subr.mxu0 %v730
      %961 = vmatpush1.msra.mxu0 %v729
      %962 = vmatprep.subr.mxu0 %v735
      %963 = vmatpush1.msra.mxu0 %v734
      %964 = vmatprep.subr.mxu0 %v740
      %965 = vmatpush1.msra.mxu0 %v739
      %966 = vmatprep.subr.mxu0 %v745
      %967 = vmatpush1.msra.mxu0 %v744
      %968 = vmatprep.subr.mxu0 %v750
      %969 = vmatpush1.msra.mxu0 %v749
      %970 = vmatprep.subr.mxu0 %v755
      %971 = vmatpush1.msra.mxu0 %v754
      %972 = vmatprep.subr.mxu0 %v760
      %973 = vmatpush1.msra.mxu0 %v759
      %974 = vmatprep.subr.mxu0 %v765
      %975 = vmatpush1.msra.mxu0 %v764
      %976 = vmatprep.subr.mxu0 %v770
      %977 = vmatpush1.msra.mxu0 %v769
      %978 = vmatprep.subr.mxu0 %v775
      %979 = vmatpush1.msra.mxu0 %v774
      %980 = vmatprep.subr.mxu0 %v780
      %981 = vmatpush1.msra.mxu0 %v779
      %982 = vmatprep.subr.mxu0 %v785
      %983 = vmatpush1.msra.mxu0 %v784
      %984 = vmatprep.subr.mxu0 %v790
      %985 = vmatpush1.msra.mxu0 %v789
      %986 = vmatprep.subr.mxu0 %v795
      %987 = vmatpush1.msra.mxu0 %v794
      %988 = vmatprep.subr.mxu0 %v800
      %989 = vmatpush1.msra.mxu0 %v799
      %990 = vmatprep.subr.mxu0 %v805
      %991 = vmatpush1.msra.mxu0 %v804
      %992 = vmatprep.subr.mxu0 %v810
      %993 = vmatpush1.msra.mxu0 %v809
      %994 = vmatprep.subr.mxu0 %v815
      %995 = vmatpush1.msra.mxu0 %v814
      %996 = vmatprep.subr.mxu0 %v820
      %997 = vmatpush1.msra.mxu0 %v819
      %998 = vmatprep.subr.mxu0 %v825
      %999 = vmatpush1.msra.mxu0 %v824
      %1000 = vmatprep.subr.mxu0 %v830
      %1001 = vmatpush1.msra.mxu0 %v829
      %1002 = vmatprep.subr.mxu0 %v835
      %1003 = vmatpush1.msra.mxu0 %v834
      %1004 = vmatprep.subr.mxu0 %v840
      %1005 = vmatpush1.msra.mxu0 %v839
      %1006 = vmatprep.subr.mxu0 %v845
      %1007 = vmatpush1.msra.mxu0 %v844
      %1008 = vmatprep.subr.mxu0 0.0
      %1009 = vmatpush1.msra.mxu0 0.0
      %1010 = vmatprep.subr.mxu0 0.0
      %1011 = vmatpush1.msra.mxu0 0.0
      %1012 = vmatprep.subr.mxu0 0.0
      %1013 = vmatpush1.msra.mxu0 0.0
      %1014 = vmatprep.subr.mxu0 0.0
      %1015 = vmatpush1.msra.mxu0 0.0
      %1016 = vmatprep.subr.mxu0 0.0
      %1017 = vmatpush1.msra.mxu0 0.0
      %1018 = vmatprep.subr.mxu0 0.0
      %1019 = vmatpush1.msra.mxu0 0.0
      %1020 = vmatprep.subr.mxu0 0.0
      %1021 = vmatpush1.msra.mxu0 0.0
      %1022 = vmatprep.mubr.f32.mxu0 %v867
      %1023 = vmatmul.mubr.f32.gmra.mrb[0].mxu0 %v716
      %v1024 = vpop.f32.mrb[0].mxu0
      %v1025 = vadd.f32 %v853, %v1024
      %v1026 = vpop.f32.mrb[0].mxu0
      %v1027 = vadd.f32 %v853, %v1026
      %1028 = vmatprep.mubr.f32.mxu0 %v870
      %1029 = vmatmul.mubr.f32.gmra.mrb[0].mxu0 %v718
      %v1030 = vpop.f32.mrb[0].mxu0
      %v1031 = vadd.f32 %v858, %v1030
      %v1032 = vpop.f32.mrb[0].mxu0
      %v1033 = vadd.f32 %v858, %v1032
      %1034 = vmatprep.mubr.f32.mxu0 %v873
      %1035 = vmatmul.mubr.f32.gmra.mrb[0].mxu0 %v720
      %v1036 = vpop.f32.mrb[0].mxu0
      %v1037 = vadd.f32 %v863, %v1036
      %v1038 = vpop.f32.mrb[0].mxu0
      %v1039 = vadd.f32 %v863, %v1038
      %1040 = vdwg.mxu0
      %1041 = vmatprep.subr.mxu0 0.0
      %1042 = vmatpush1.msra.mxu0 %v726
      %1043 = vmatprep.subr.mxu0 0.0
      %1044 = vmatpush1.msra.mxu0 %v731
      %1045 = vmatprep.subr.mxu0 0.0
      %1046 = vmatpush1.msra.mxu0 %v736
      %1047 = vmatprep.subr.mxu0 0.0
      %1048 = vmatpush1.msra.mxu0 %v741
      %1049 = vmatprep.subr.mxu0 0.0
      %1050 = vmatpush1.msra.mxu0 %v746
      %1051 = vmatprep.subr.mxu0 0.0
      %1052 = vmatpush1.msra.mxu0 %v751
      %1053 = vmatprep.subr.mxu0 0.0
      %1054 = vmatpush1.msra.mxu0 %v756
      %1055 = vmatprep.subr.mxu0 0.0
      %1056 = vmatpush1.msra.mxu0 %v761
      %1057 = vmatprep.subr.mxu0 0.0
      %1058 = vmatpush1.msra.mxu0 %v766
      %1059 = vmatprep.subr.mxu0 0.0
      %1060 = vmatpush1.msra.mxu0 %v771
      %1061 = vmatprep.subr.mxu0 0.0
      %1062 = vmatpush1.msra.mxu0 %v776
      %1063 = vmatprep.subr.mxu0 0.0
      %1064 = vmatpush1.msra.mxu0 %v781
      %1065 = vmatprep.subr.mxu0 0.0
      %1066 = vmatpush1.msra.mxu0 %v786
      %1067 = vmatprep.subr.mxu0 0.0
      %1068 = vmatpush1.msra.mxu0 %v791
      %1069 = vmatprep.subr.mxu0 0.0
      %1070 = vmatpush1.msra.mxu0 %v796
      %1071 = vmatprep.subr.mxu0 0.0
      %1072 = vmatpush1.msra.mxu0 %v801
      %1073 = vmatprep.subr.mxu0 0.0
      %1074 = vmatpush1.msra.mxu0 %v806
      %1075 = vmatprep.subr.mxu0 0.0
      %1076 = vmatpush1.msra.mxu0 %v811
      %1077 = vmatprep.subr.mxu0 0.0
      %1078 = vmatpush1.msra.mxu0 %v816
      %1079 = vmatprep.subr.mxu0 0.0
      %1080 = vmatpush1.msra.mxu0 %v821
      %1081 = vmatprep.subr.mxu0 0.0
      %1082 = vmatpush1.msra.mxu0 %v826
      %1083 = vmatprep.subr.mxu0 0.0
      %1084 = vmatpush1.msra.mxu0 %v831
      %1085 = vmatprep.subr.mxu0 0.0
      %1086 = vmatpush1.msra.mxu0 %v836
      %1087 = vmatprep.subr.mxu0 0.0
      %1088 = vmatpush1.msra.mxu0 %v841
      %1089 = vmatprep.subr.mxu0 0.0
      %1090 = vmatpush1.msra.mxu0 %v846
      %1091 = vmatprep.subr.mxu0 0.0
      %1092 = vmatpush1.msra.mxu0 0.0
      %1093 = vmatprep.subr.mxu0 0.0
      %1094 = vmatpush1.msra.mxu0 0.0
      %1095 = vmatprep.subr.mxu0 0.0
      %1096 = vmatpush1.msra.mxu0 0.0
      %1097 = vmatprep.subr.mxu0 0.0
      %1098 = vmatpush1.msra.mxu0 0.0
      %1099 = vmatprep.subr.mxu0 0.0
      %1100 = vmatpush1.msra.mxu0 0.0
      %1101 = vmatprep.subr.mxu0 0.0
      %1102 = vmatpush1.msra.mxu0 0.0
      %1103 = vmatprep.subr.mxu0 0.0
      %1104 = vmatpush1.msra.mxu0 0.0
      %1105 = vmatprep.mubr.f32.mxu0 %v867
      %1106 = vmatmul.mubr.f32.gmra.mrb[0].mxu0 %v716
      %v1107 = vpop.f32.mrb[0].mxu0
      %v1108 = vadd.f32 %v853, %v1107
      %v1109 = vpop.f32.mrb[0].mxu0
      %1110 = vmatprep.mubr.f32.mxu0 %v870
      %1111 = vmatmul.mubr.f32.gmra.mrb[0].mxu0 %v718
      %v1112 = vpop.f32.mrb[0].mxu0
      %v1113 = vadd.f32 %v858, %v1112
      %v1114 = vpop.f32.mrb[0].mxu0
      %1115 = vmatprep.mubr.f32.mxu0 %v873
      %1116 = vmatmul.mubr.f32.gmra.mrb[0].mxu0 %v720
      %v1117 = vpop.f32.mrb[0].mxu0
      %v1118 = vadd.f32 %v863, %v1117
      %v1119 = vpop.f32.mrb[0].mxu0
      %1120 = vdwg.mxu0
      %v1121 = vmul.f32 %v942, %v942
      %v1122 = vmul.f32 %v944, %v944
      %v1123 = vmul.f32 %v948, %v948
      %v1124 = vmul.f32 %v950, %v950
      %v1125 = vmul.f32 %v954, %v954
      %v1126 = vmul.f32 %v956, %v956
      %1127 = vst [vmem:[#allocation3] sm:$0xff] %v1121
      %vm1128 = vcmask 261120
      %1129 = vst.msk [vmem:[#allocation3 + $0x8] sm:$0xff] %vm1128, %v1122
      %1130 = vst [vmem:[#allocation3 + $0x10] sm:$0xff] %v1123
      %1131 = vst.msk [vmem:[#allocation3 + $0x18] sm:$0xff] %vm1128, %v1124
      %1132 = vst [vmem:[#allocation3 + $0x20] sm:$0xf] %v1125
      %vm1133 = vcmask 257024
      %1134 = vst.msk [vmem:[#allocation3 + $0x28] sm:$0xf] %vm1133, %v1126
      %v1135 = vmul.f32 %v1025, %v1025
      %v1136 = vmul.f32 %v1031, %v1031
      %v1137 = vmul.f32 %v1037, %v1037
      %vm1144 = vcmask 1043456
      %v1145 = vrot.slane %v1122, 4
      %v1146 = vrot.slane %v1135, 4
      %v1147 = vrot.slane %v1124, 4
      %v1148 = vsel %vm1144, %v1145, %v1147
      %v1149 = vrot.slane %v1136, 4
      %v1150 = vsel %vm1144, %v1146, %v1149
      %v1151 = vrot.slane %v1126, 4
      %v1152 = vsel %vm1144, %v1147, %v1151
      %v1153 = vrot.slane %v1137, 4
      %v1154 = vsel %vm1144, %v1149, %v1153
      %1155 = vrot.lane.b32.xlu0 %v1145, 96
      %v1156 = vpop.permute.xlu0 %1155
      %1157 = vrot.lane.b32.xlu0 %v1146, 96
      %v1158 = vpop.permute.xlu0 %1157
      %1159 = vrot.lane.b32.xlu0 %v1148, 96
      %v1160 = vpop.permute.xlu0 %1159
      %1161 = vrot.lane.b32.xlu0 %v1150, 96
      %v1162 = vpop.permute.xlu0 %1161
      %1163 = vrot.lane.b32.xlu0 %v1152, 96
      %v1164 = vpop.permute.xlu0 %1163
      %1165 = vrot.lane.b32.xlu0 %v1154, 96
      %v1166 = vpop.permute.xlu0 %1165
      %vm1167 = vcmask 785408
      %v1168 = vsel %vm1167, %v1156, %v1158
      %v1169 = vsel %vm1167, %v1160, %v1162
      %v1170 = vsel %vm1167, %v1164, %v1166
      %1177 = vst [vmem:[#allocation3 + $0x20] sm:$0xf0] %v1168
      %vm1178 = vcmask 261124
      %1179 = vst.msk [vmem:[#allocation3 + $0x28] sm:$0xf0] %vm1178, %v1158
      %1180 = vst [vmem:[#allocation3 + $0x30] sm:$0xff] %v1169
      %1181 = vst.msk [vmem:[#allocation3 + $0x38] sm:$0xff] %vm1128, %v1162
      %1182 = vst [vmem:[#allocation3 + $0x40] sm:$0xff] %v1170
      %1183 = vst.msk [vmem:[#allocation3 + $0x48] sm:$0xff] %vm1128, %v1166
      %v1184 = vmul.f32 %v1027, %v1027
      %v1185 = vmul.f32 %v1033, %v1033
      %v1186 = vmul.f32 %v1039, %v1039
      %1190 = vrot.lane.b32.xlu0 %v1135, 64
      %v1191 = vpop.permute.xlu0 %1190
      %1192 = vrot.lane.b32.xlu0 %v1184, 64
      %v1193 = vpop.permute.xlu0 %1192
      %1194 = vrot.lane.b32.xlu0 %v1136, 64
      %v1195 = vpop.permute.xlu0 %1194
      %1196 = vrot.lane.b32.xlu0 %v1185, 64
      %v1197 = vpop.permute.xlu0 %1196
      %1198 = vrot.lane.b32.xlu0 %v1137, 64
      %v1199 = vpop.permute.xlu0 %1198
      %1200 = vrot.lane.b32.xlu0 %v1186, 64
      %v1201 = vpop.permute.xlu0 %1200
      %vm1202 = vcmask 523264
      %v1203 = vsel %vm1202, %v1191, %v1193
      %v1204 = vsel %vm1202, %v1195, %v1197
      %v1205 = vsel %vm1202, %v1199, %v1201
      %1212 = vst [vmem:[#allocation3 + $0x50] sm:$0xff] %v1203
      %1213 = vst.msk [vmem:[#allocation3 + $0x58] sm:$0xff] %vm1128, %v1193
      %1214 = vst [vmem:[#allocation3 + $0x60] sm:$0xff] %v1204
      %1215 = vst.msk [vmem:[#allocation3 + $0x68] sm:$0xff] %vm1128, %v1197
      %1216 = vst [vmem:[#allocation3 + $0x70] sm:$0xf] %v1205
      %1217 = vst.msk [vmem:[#allocation3 + $0x78] sm:$0xf] %vm1133, %v1201
      %v1218 = vmul.f32 %v1108, %v1108
      %v1219 = vmul.f32 %v1113, %v1113
      %v1220 = vmul.f32 %v1118, %v1118
      %v1224 = vrot.slane %v1184, 4
      %v1225 = vrot.slane %v1218, 4
      %v1226 = vrot.slane %v1185, 4
      %v1227 = vsel %vm1144, %v1224, %v1226
      %v1228 = vrot.slane %v1219, 4
      %v1229 = vsel %vm1144, %v1225, %v1228
      %v1230 = vrot.slane %v1186, 4
      %v1231 = vsel %vm1144, %v1226, %v1230
      %v1232 = vrot.slane %v1220, 4
      %v1233 = vsel %vm1144, %v1228, %v1232
      %1234 = vrot.lane.b32.xlu0 %v1224, 32
      %v1235 = vpop.permute.xlu0 %1234
      %1236 = vrot.lane.b32.xlu0 %v1225, 32
      %v1237 = vpop.permute.xlu0 %1236
      %1238 = vrot.lane.b32.xlu0 %v1227, 32
      %v1239 = vpop.permute.xlu0 %1238
      %1240 = vrot.lane.b32.xlu0 %v1229, 32
      %v1241 = vpop.permute.xlu0 %1240
      %1242 = vrot.lane.b32.xlu0 %v1231, 32
      %v1243 = vpop.permute.xlu0 %1242
      %1244 = vrot.lane.b32.xlu0 %v1233, 32
      %v1245 = vpop.permute.xlu0 %1244
      %v1246 = vsel %vm1128, %v1235, %v1237
      %v1247 = vsel %vm1128, %v1239, %v1241
      %v1248 = vsel %vm1128, %v1243, %v1245
      %1255 = vst [vmem:[#allocation3 + $0x70] sm:$0xf0] %v1246
      %1256 = vst.msk [vmem:[#allocation3 + $0x78] sm:$0xf0] %vm1178, %v1237
      %1257 = vst [vmem:[#allocation3 + $0x80] sm:$0xff] %v1247
      %1258 = vst.msk [vmem:[#allocation3 + $0x88] sm:$0xff] %vm1128, %v1241
      %1259 = vst [vmem:[#allocation3 + $0x90] sm:$0xff] %v1248
      %1260 = vst.msk [vmem:[#allocation3 + $0x98] sm:$0xff] %vm1128, %v1245
      %v1261 = vld [vmem:[#allocation3] sm:$0xff]
      %v1262 = vld [vmem:[#allocation3 + $0x8] sm:$0xff]
      %v1263 = vld [vmem:[#allocation3 + $0x10] sm:$0xff]
      %v1264 = vld [vmem:[#allocation3 + $0x18] sm:$0xff]
      %v1265 = vld [vmem:[#allocation3 + $0x20] sm:$0xff]
      %v1266 = vld [vmem:[#allocation3 + $0x28] sm:$0xff]
      %v1267 = vld [vmem:[#allocation3 + $0x30] sm:$0xff]
      %v1268 = vld [vmem:[#allocation3 + $0x38] sm:$0xff]
      %v1269 = vld [vmem:[#allocation3 + $0x40] sm:$0xff]
      %v1270 = vld [vmem:[#allocation3 + $0x48] sm:$0xff]
      %v1271 = vld [vmem:[#allocation3 + $0x50] sm:$0xff]
      %v1272 = vld [vmem:[#allocation3 + $0x58] sm:$0xff]
      %v1273 = vld [vmem:[#allocation3 + $0x60] sm:$0xff]
      %v1274 = vld [vmem:[#allocation3 + $0x68] sm:$0xff]
      %v1275 = vld [vmem:[#allocation3 + $0x70] sm:$0xff]
      %v1276 = vld [vmem:[#allocation3 + $0x78] sm:$0xff]
      %v1277 = vld [vmem:[#allocation3 + $0x80] sm:$0xff]
      %v1278 = vld [vmem:[#allocation3 + $0x88] sm:$0xff]
      %v1279 = vld [vmem:[#allocation3 + $0x90] sm:$0xff]
      %v1280 = vld [vmem:[#allocation3 + $0x98] sm:$0xff]
      %v1281 = vld [vmem:[%s3] sm:$0xff]
      %v1282 = vld [vmem:[%s3 + $0x8] sm:$0xff]
      %v1283 = vld [vmem:[%s3 + $0x10] sm:$0xff]
      %v1284 = vld [vmem:[%s3 + $0x18] sm:$0xff]
      %v1285 = vld [vmem:[%s3 + $0x20] sm:$0xff]
      %v1286 = vld [vmem:[%s3 + $0x28] sm:$0xff]
      %v1287 = vld [vmem:[%s3 + $0x30] sm:$0xff]
      %v1288 = vld [vmem:[%s3 + $0x38] sm:$0xff]
      %v1289 = vld [vmem:[%s3 + $0x40] sm:$0xff]
      %v1290 = vld [vmem:[%s3 + $0x48] sm:$0xff]
      %v1291 = vld [vmem:[%s3 + $0x50] sm:$0xff]
      %v1292 = vld [vmem:[%s3 + $0x58] sm:$0xff]
      %v1293 = vld [vmem:[%s3 + $0x60] sm:$0xff]
      %v1294 = vld [vmem:[%s3 + $0x68] sm:$0xff]
      %v1295 = vld [vmem:[%s3 + $0x70] sm:$0xff]
      %v1296 = vld [vmem:[%s3 + $0x78] sm:$0xff]
      %v1297 = vld [vmem:[%s3 + $0x80] sm:$0xff]
      %v1298 = vld [vmem:[%s3 + $0x88] sm:$0xff]
      %v1299 = vld [vmem:[%s3 + $0x90] sm:$0xff]
      %v1300 = vld [vmem:[%s3 + $0x98] sm:$0xff]
      %v1302 = vsel %vm1128, %v1262, 0
      %v1305 = vsel %vm1128, %v1264, 0
      %v1308 = vsel %vm1128, %v1266, 0
      %v1311 = vsel %vm1128, %v1268, 0
      %v1314 = vsel %vm1128, %v1270, 0
      %v1317 = vsel %vm1128, %v1272, 0
      %v1320 = vsel %vm1128, %v1274, 0
      %v1323 = vsel %vm1128, %v1276, 0
      %v1326 = vsel %vm1128, %v1278, 0
      %v1329 = vsel %vm1128, %v1280, 0
      %1331 = vmatprep.subr.mxu0 0.0
      %1332 = vmatpush1.msra.mxu0 %v1281
      %1333 = vmatprep.subr.mxu0 0.0
      %1334 = vmatpush1.msra.mxu0 %v1282
      %1335 = vmatprep.subr.mxu0 0.0
      %1336 = vmatpush1.msra.mxu0 %v1283
      %1337 = vmatprep.subr.mxu0 0.0
      %1338 = vmatpush1.msra.mxu0 %v1284
      %1339 = vmatprep.subr.mxu0 0.0
      %1340 = vmatpush1.msra.mxu0 %v1285
      %1341 = vmatprep.subr.mxu0 0.0
      %1342 = vmatpush1.msra.mxu0 %v1286
      %1343 = vmatprep.subr.mxu0 0.0
      %1344 = vmatpush1.msra.mxu0 %v1287
      %1345 = vmatprep.subr.mxu0 0.0
      %1346 = vmatpush1.msra.mxu0 %v1288
      %1347 = vmatprep.subr.mxu0 0.0
      %1348 = vmatpush1.msra.mxu0 %v1289
      %1349 = vmatprep.subr.mxu0 0.0
      %1350 = vmatpush1.msra.mxu0 %v1290
      %1351 = vmatprep.subr.mxu0 0.0
      %1352 = vmatpush1.msra.mxu0 %v1291
      %1353 = vmatprep.subr.mxu0 0.0
      %1354 = vmatpush1.msra.mxu0 %v1292
      %1355 = vmatprep.subr.mxu0 0.0
      %1356 = vmatpush1.msra.mxu0 %v1293
      %1357 = vmatprep.subr.mxu0 0.0
      %1358 = vmatpush1.msra.mxu0 %v1294
      %1359 = vmatprep.subr.mxu0 0.0
      %1360 = vmatpush1.msra.mxu0 %v1295
      %1361 = vmatprep.subr.mxu0 0.0
      %1362 = vmatpush1.msra.mxu0 %v1296
      %1363 = vmatprep.subr.mxu0 0.0
      %1364 = vmatpush1.msra.mxu0 %v1297
      %1365 = vmatprep.subr.mxu0 0.0
      %1366 = vmatpush1.msra.mxu0 %v1298
      %1367 = vmatprep.subr.mxu0 0.0
      %1368 = vmatpush1.msra.mxu0 %v1299
      %1369 = vmatprep.subr.mxu0 0.0
      %1370 = vmatpush1.msra.mxu0 %v1300
      %1371 = vmatprep.subr.mxu0 0.0
      %1372 = vmatpush1.msra.mxu0 0.0
      %1373 = vmatprep.subr.mxu0 0.0
      %1374 = vmatpush1.msra.mxu0 0.0
      %1375 = vmatprep.subr.mxu0 0.0
      %1376 = vmatpush1.msra.mxu0 0.0
      %1377 = vmatprep.subr.mxu0 0.0
      %1378 = vmatpush1.msra.mxu0 0.0
      %1379 = vmatprep.subr.mxu0 0.0
      %1380 = vmatpush1.msra.mxu0 0.0
      %1381 = vmatprep.subr.mxu0 0.0
      %1382 = vmatpush1.msra.mxu0 0.0
      %1383 = vmatprep.subr.mxu0 0.0
      %1384 = vmatpush1.msra.mxu0 0.0
      %1385 = vmatprep.subr.mxu0 0.0
      %1386 = vmatpush1.msra.mxu0 0.0
      %1387 = vmatprep.subr.mxu0 0.0
      %1388 = vmatpush1.msra.mxu0 0.0
      %1389 = vmatprep.subr.mxu0 0.0
      %1390 = vmatpush1.msra.mxu0 0.0
      %1391 = vmatprep.subr.mxu0 0.0
      %1392 = vmatpush1.msra.mxu0 0.0
      %1393 = vmatprep.subr.mxu0 0.0
      %1394 = vmatpush1.msra.mxu0 0.0
      %1395 = vmatprep.mubr.f32.mxu0 %v1302
      %1396 = vmatmul.mubr.f32.gmra.mrb[0].mxu0 %v1261
      %v1397 = vpop.f32.mrb[0].mxu0
      %v1398 = vadd.f32 0.0, %v1397
      %v1399 = vpop.f32.mrb[0].mxu0
      %1400 = vmatprep.mubr.f32.mxu0 %v1305
      %1401 = vmatmul.mubr.f32.gmra.mrb[0].mxu0 %v1263
      %v1402 = vpop.f32.mrb[0].mxu0
      %v1403 = vadd.f32 0.0, %v1402
      %v1404 = vpop.f32.mrb[0].mxu0
      %1405 = vmatprep.mubr.f32.mxu0 %v1308
      %1406 = vmatmul.mubr.f32.gmra.mrb[0].mxu0 %v1265
      %v1407 = vpop.f32.mrb[0].mxu0
      %v1408 = vadd.f32 0.0, %v1407
      %v1409 = vpop.f32.mrb[0].mxu0
      %1410 = vmatprep.mubr.f32.mxu0 %v1311
      %1411 = vmatmul.mubr.f32.gmra.mrb[0].mxu0 %v1267
      %v1412 = vpop.f32.mrb[0].mxu0
      %v1413 = vadd.f32 0.0, %v1412
      %v1414 = vpop.f32.mrb[0].mxu0
      %1415 = vmatprep.mubr.f32.mxu0 %v1314
      %1416 = vmatmul.mubr.f32.gmra.mrb[0].mxu0 %v1269
      %v1417 = vpop.f32.mrb[0].mxu0
      %v1418 = vadd.f32 0.0, %v1417
      %v1419 = vpop.f32.mrb[0].mxu0
      %1420 = vmatprep.mubr.f32.mxu0 %v1317
      %1421 = vmatmul.mubr.f32.gmra.mrb[0].mxu0 %v1271
      %v1422 = vpop.f32.mrb[0].mxu0
      %v1423 = vadd.f32 0.0, %v1422
      %v1424 = vpop.f32.mrb[0].mxu0
      %1425 = vmatprep.mubr.f32.mxu0 %v1320
      %1426 = vmatmul.mubr.f32.gmra.mrb[0].mxu0 %v1273
      %v1427 = vpop.f32.mrb[0].mxu0
      %v1428 = vadd.f32 0.0, %v1427
      %v1429 = vpop.f32.mrb[0].mxu0
      %1430 = vmatprep.mubr.f32.mxu0 %v1323
      %1431 = vmatmul.mubr.f32.gmra.mrb[0].mxu0 %v1275
      %v1432 = vpop.f32.mrb[0].mxu0
      %v1433 = vadd.f32 0.0, %v1432
      %v1434 = vpop.f32.mrb[0].mxu0
      %1435 = vmatprep.mubr.f32.mxu0 %v1326
      %1436 = vmatmul.mubr.f32.gmra.mrb[0].mxu0 %v1277
      %v1437 = vpop.f32.mrb[0].mxu0
      %v1438 = vadd.f32 0.0, %v1437
      %v1439 = vpop.f32.mrb[0].mxu0
      %1440 = vmatprep.mubr.f32.mxu0 %v1329
      %1441 = vmatmul.mubr.f32.gmra.mrb[0].mxu0 %v1279
      %v1442 = vpop.f32.mrb[0].mxu0
      %v1443 = vadd.f32 0.0, %v1442
      %v1444 = vpop.f32.mrb[0].mxu0
      %1445 = vdwg.mxu0
      %v1446 = vmul.f32 %v1398, 0.013333334
      %v1447 = vmul.f32 %v1403, 0.013333334
      %v1448 = vmul.f32 %v1408, 0.013333334
      %v1449 = vmul.f32 %v1413, 0.013333334
      %v1450 = vmul.f32 %v1418, 0.013333334
      %v1451 = vmul.f32 %v1423, 0.013333334
      %v1452 = vmul.f32 %v1428, 0.013333334
      %v1453 = vmul.f32 %v1433, 0.013333334
      %v1454 = vmul.f32 %v1438, 0.013333334
      %v1455 = vmul.f32 %v1443, 0.013333334
      %v1456 = vmax.f32 %v1446, 1e-06
      %v1457 = vmax.f32 %v1447, 1e-06
      %v1458 = vmax.f32 %v1448, 1e-06
      %v1459 = vmax.f32 %v1449, 1e-06
      %v1460 = vmax.f32 %v1450, 1e-06
      %v1461 = vmax.f32 %v1451, 1e-06
      %v1462 = vmax.f32 %v1452, 1e-06
      %v1463 = vmax.f32 %v1453, 1e-06
      %v1464 = vmax.f32 %v1454, 1e-06
      %v1465 = vmax.f32 %v1455, 1e-06
      %v1466 = vlog2.pop %v1456
      %v1467 = vmul.f32 %v1466, 0.6931472
      %v1468 = vlog2.pop %v1457
      %v1469 = vmul.f32 %v1468, 0.6931472
      %v1470 = vlog2.pop %v1458
      %v1471 = vmul.f32 %v1470, 0.6931472
      %v1472 = vlog2.pop %v1459
      %v1473 = vmul.f32 %v1472, 0.6931472
      %v1474 = vlog2.pop %v1460
      %v1475 = vmul.f32 %v1474, 0.6931472
      %v1476 = vlog2.pop %v1461
      %v1477 = vmul.f32 %v1476, 0.6931472
      %v1478 = vlog2.pop %v1462
      %v1479 = vmul.f32 %v1478, 0.6931472
      %v1480 = vlog2.pop %v1463
      %v1481 = vmul.f32 %v1480, 0.6931472
      %v1482 = vlog2.pop %v1464
      %v1483 = vmul.f32 %v1482, 0.6931472
      %v1484 = vlog2.pop %v1465
      %v1485 = vmul.f32 %v1484, 0.6931472
      %vm1486 = vcmask 39936
      %1487 = vst.msk [vmem:[%s199] sm:$0xff] %vm1486, %v1467
      %1488 = vst.msk [vmem:[%s199 + $0x8] sm:$0xff] %vm1486, %v1469
      %1489 = vst.msk [vmem:[%s199 + $0x10] sm:$0xff] %vm1486, %v1471
      %1490 = vst.msk [vmem:[%s199 + $0x18] sm:$0xff] %vm1486, %v1473
      %1491 = vst.msk [vmem:[%s199 + $0x20] sm:$0xff] %vm1486, %v1475
      %1492 = vst.msk [vmem:[%s199 + $0x28] sm:$0xff] %vm1486, %v1477
      %1493 = vst.msk [vmem:[%s199 + $0x30] sm:$0xff] %vm1486, %v1479
      %1494 = vst.msk [vmem:[%s199 + $0x38] sm:$0xff] %vm1486, %v1481
      %1495 = vst.msk [vmem:[%s199 + $0x40] sm:$0xff] %vm1486, %v1483
      %1496 = vst.msk [vmem:[%s199 + $0x48] sm:$0xff] %vm1486, %v1485
      %p1497 = scmp.lt.s32.totalorder %s15, 1
      %s1498 = scalar_select %p1497, %s15, 1
      %s1499 = smul.addr %s1498, 10
      %s1500 = smul.addr %s1499, 8
      %s1501 = scalar_lea.vmem %s4, %s1500
      // Predicated region
      $region37: #{tpu_custom_call.1} parent=35 // pred_check
        %p1502 = pneg %p122
      $region38: #{tpu_custom_call.1} parent=35 // pred_check_branch
        %1504 = sbr.rel (%p1502) target = $region40
      $region39: #{tpu_custom_call.1} parent=35 // pred_region
        _
      $region40: #{tpu_custom_call.1} parent=35 // pred_fallthru
        _
    $region36: #{tpu_custom_call.1} parent=5 // pred_fallthru
      _
    %p1505 = scmp.le.s32.totalorder 2, %s10
    // Predicated region
    $region41: #{tpu_custom_call.1} parent=5 // pred_check
      %p1506 = pneg %p1505
    $region42: #{tpu_custom_call.1} parent=5 // pred_check_branch
      %1508 = sbr.rel (%p1506) target = $region44
    $region43: #{tpu_custom_call.1} parent=5 // pred_region
      %s1509 = ssub.s32 %s10, 2
      // Predicated region
      $region45: #{tpu_custom_call.1} parent=43 // pred_check
        %p1510 = pneg %p128
      $region46: #{tpu_custom_call.1} parent=43 // pred_check_branch
        %1512 = sbr.rel (%p1510) target = $region48
      $region47: #{tpu_custom_call.1} parent=43 // pred_region
        %p1513 = scmp.lt.s32.totalorder %s16, 1
        %s1514 = scalar_select %p1513, %s16, 1
        %s1515 = smul.addr %s1514, 10
        %s1516 = smul.addr %s1515, 8
        %s1517 = scalar_lea.vmem %s4, %s1516
      $region48: #{tpu_custom_call.1} parent=43 // pred_fallthru
        _
    $region44: #{tpu_custom_call.1} parent=5 // pred_fallthru
      _
  $region6: #{tpu_custom_call.1} parent=0 // loop_footer
    %s14 = sadd.s32 1, %s10
  $region7: #{tpu_custom_call.1} parent=0 // loop_footer_branch
    %9 = sbr.rel target = $region3
  $region8: #{tpu_custom_call.1} parent=0 // loop_exit
    _

</llo_original>
